<compile_context>
chip_gen: v7x
topology: tpu7x:2x2x1
jax: 0.10.0
libtpu: 0.0.40
codegen_flags: <defaults>
</compile_context>

<pallas_src>
import functools
import math

import jax
import jax.numpy as jnp
from jax import lax
from jax.experimental import pallas as pl
from jax.experimental.pallas import tpu as pltpu

_HEAD_W = 128  # lane-dense width of the packed encoder-head output slab


def _nbytes(shape, dtype):
    return math.prod(shape) * jnp.dtype(dtype).itemsize


def _compiler_params(semantics, buffer_bytes):
    """VMEM limit from the actual (double-buffered) footprint + headroom."""
    try:
        cap = int(getattr(pltpu.get_tpu_info(), "vmem_capacity_bytes", 64 << 20))
    except Exception:
        cap = 64 << 20
    need = int(buffer_bytes) + (8 << 20)          # compiler/internal headroom
    limit = int(max(16 << 20, min(need, cap * 9 // 10)))
    return pltpu.CompilerParams(dimension_semantics=semantics,
                                vmem_limit_bytes=limit)


# --------------------------- stage 1: encoder -------------------------------
def _encoder_kernel(n_latent,
                    x_ref, w12_ref, bn3_ref, hw_ref, hb_ref,
                    eps_z_ref, wd_ref, bd_ref,
                    slab_ref, fx_ref, acc_ref):
    L = n_latent
    g = pl.program_id(0)

    @pl.when(g == 0)
    def _():
        acc_ref[...] = jnp.zeros_like(acc_ref[...])

    # fused  x @ [W_enc_z | W_enc_l]   (x tile cast to bf16 here, f32 acc)
    acc_ref[...] += jnp.dot(x_ref[...].astype(jnp.bfloat16), w12_ref[...],
                            preferred_element_type=jnp.float32)

    @pl.when(g == pl.num_programs(0) - 1)
    def _():
        h = acc_ref[...] + bn3_ref[0:1, :]
        # two-pass train-mode BatchNorm stats (biased variance), eps = 1e-3
        m = jnp.mean(h, axis=0, keepdims=True)
        c = h - m
        v = jnp.mean(c * c, axis=0, keepdims=True)
        hn = c * lax.rsqrt(v + 0.001) * bn3_ref[1:2, :] + bn3_ref[2:3, :]
        fx_cat = jnp.maximum(hn, 0.0)      # [fx_z | fx_l]; dropout = identity

        # all four encoder heads in ONE matmul against a block-diagonal,
        # 128-lane-padded weight -> lane-dense (B, 128) output slab
        heads = jnp.dot(fx_cat.astype(jnp.bfloat16), hw_ref[...],
                        preferred_element_type=jnp.float32) + hb_ref[...]
        slab_ref[...] = heads

        mu_z = heads[:, 0:L]
        sigma_z = jnp.exp(heads[:, L:2 * L]) + 1e-4
        z = mu_z + jnp.sqrt(sigma_z) * eps_z_ref[...]          # qz.rsample()

        fx = jnp.dot(z.astype(jnp.bfloat16), wd_ref[...],
                     preferred_element_type=jnp.float32) + bd_ref[...]
        fx_ref[...] = jnp.maximum(fx, 0.0).astype(fx_ref.dtype)  # bf16 hidden


# ------------- stage 2 (fused): h + logits(VMEM) + softmax + mu -------------
def _decoder_kernel(n_latent, gene_tile,
                    fx_ref, wrh_ref, brh_ref, slab_ref, eps_l_ref,
                    h_ref, mu_ref,
                    logits_vmem, m_sc, s_sc, ls_sc):
    L = n_latent
    Gt = gene_tile
    phase = pl.program_id(0)
    g = pl.program_id(1)
    last = pl.num_programs(1) - 1
    is_p0 = phase == 0

    @pl.when(is_p0 & (g == 0))
    def _():
        m_sc[...] = jnp.full_like(m_sc[...], -jnp.inf)
        s_sc[...] = jnp.zeros_like(s_sc[...])

    @pl.when(is_p0)
    def _():
        # fused  fx @ [Wr_tile | Wh_tile]   (bf16 in, f32 accumulate)
        cat = jnp.dot(fx_ref[...], wrh_ref[...],
                      preferred_element_type=jnp.float32) + brh_ref[...]
        logits = cat[:, :Gt]
        h_ref[...] = cat[:, Gt:]
        logits_vmem[g] = logits.astype(logits_vmem.dtype)   # stays in VMEM

        # online-softmax running statistics across gene tiles (exact softmax)
        m_new = jnp.maximum(m_sc[...], jnp.max(logits, axis=-1, keepdims=True))
        s_sc[...] = (s_sc[...] * jnp.exp(m_sc[...] - m_new)
                     + jnp.sum(jnp.exp(logits - m_new), axis=-1, keepdims=True))
        m_sc[...] = m_new

    @pl.when(is_p0 & (g == last))
    def _():
        mu_l = slab_ref[:, 2 * L:2 * L + 1]
        sigma_l = jnp.exp(slab_ref[:, 2 * L + 1:2 * L + 2]) + 1e-4
        l = jnp.exp(mu_l + jnp.sqrt(sigma_l) * eps_l_ref[...])  # exp(ql.rsample())
        ls_sc[...] = l / s_sc[...]

    @pl.when(phase == 1)
    def _():
        logits = logits_vmem[g].astype(jnp.float32)
        mu_ref[...] = jnp.exp(logits - m_sc[...]) * ls_sc[...]


# ------------------------------- wrapper -------------------------------------
def pack_params(params, gene_tile=512):
    """One-time layout plumbing: concat / interleave weights, cast to bf16."""
    f32, bf16 = jnp.float32, jnp.bfloat16
    w1, w2 = params["w1"], params["w2"]
    G, H = w1.shape
    L = params["wmz"].shape[1]
    gene_tile = int(min(gene_tile, G))
    assert 2 * L + 2 <= _HEAD_W, "latent dim too large for the 128-wide head slab"
    assert G % gene_tile == 0 and gene_tile % 128 == 0, \
        "n_genes must be a multiple of the (128-aligned) gene tile"

    w12 = jnp.concatenate([w1, w2], axis=1).astype(bf16)                 # (G, 2H)
    # BatchNorm constants consolidated into one (3, 2H) slab: [bias; gamma; beta]
    bn3 = jnp.concatenate([
        jnp.concatenate([params["b1"], params["b2"]], axis=1),
        jnp.concatenate([params["g1"], params["g2"]], axis=1),
        jnp.concatenate([params["be1"], params["be2"]], axis=1)], axis=0).astype(f32)

    # block-diagonal head weight, zero-padded to 128 lanes:
    #   rows 0:H  -> cols [0:L]=mu_z, [L:2L]=log sigma_z        (from fx_z)
    #   rows H:2H -> cols [2L]=mu_l,  [2L+1]=log sigma_l        (from fx_l)
    hw = jnp.zeros((2 * H, _HEAD_W), f32)
    hw = hw.at[:H, 0:L].set(params["wmz"])
    hw = hw.at[:H, L:2 * L].set(params["wsz"])
    hw = hw.at[H:, 2 * L:2 * L + 1].set(params["wml"])
    hw = hw.at[H:, 2 * L + 1:2 * L + 2].set(params["wsl"])
    hw = hw.astype(bf16)

    hb = jnp.zeros((1, _HEAD_W), f32)
    hb = hb.at[:, 0:L].set(params["bmz"])
    hb = hb.at[:, L:2 * L].set(params["bsz"])
    hb = hb.at[:, 2 * L:2 * L + 1].set(params["bml"])
    hb = hb.at[:, 2 * L + 1:2 * L + 2].set(params["bsl"])

    # [Wr | Wh] interleaved PER GENE TILE so each grid step reads one
    # contiguous (H, 2*gene_tile) block:  tile g -> [Wr[:, g] | Wh[:, g]]
    nT = G // gene_tile
    wr = params["wr"].reshape(H, nT, gene_tile)
    wh = params["wh"].reshape(H, nT, gene_tile)
    wrh = jnp.concatenate([wr, wh], axis=2).reshape(H, nT * 2 * gene_tile).astype(bf16)
    br = params["br"].reshape(1, nT, gene_tile)
    bh = params["bh"].reshape(1, nT, gene_tile)
    brh = jnp.concatenate([br, bh], axis=2).reshape(1, nT * 2 * gene_tile).astype(f32)

    return dict(w12=w12, bn3=bn3, hw=hw, hb=hb,
                wd=params["wd"].astype(bf16), bd=params["bd"].astype(f32),
                wrh=wrh, brh=brh,
                n_latent=L, n_hidden=H, gene_tile=gene_tile)


def scvi_vae_forward(x, eps_z, eps_l, packed):
    B, G = x.shape
    H = packed["n_hidden"]
    L = packed["n_latent"]
    Gt = packed["gene_tile"]
    nT = G // Gt
    f32, bf16 = jnp.float32, jnp.bfloat16

    def const2d(arr):
        return pl.BlockSpec(arr.shape, lambda *_: (0, 0))

    # ---- stage 1: encoder (gene-reduction grid, "arbitrary") ----
    s1_vmem = (2 * _nbytes((B, Gt), f32)                # x tile (f32, cast in-kernel)
               + 2 * _nbytes((Gt, 2 * H), bf16)         # [W1|W2] tile
               + 2 * _nbytes((3, 2 * H), f32)           # bn3
               + 2 * _nbytes((2 * H, _HEAD_W), bf16)    # hw
               + 2 * _nbytes((1, _HEAD_W), f32)         # hb
               + 2 * _nbytes((B, L), f32)               # eps_z
               + 2 * _nbytes((L, H), bf16)              # wd
               + 2 * _nbytes((1, H), f32)               # bd
               + 2 * _nbytes((B, _HEAD_W), f32)         # slab out
               + 2 * _nbytes((B, H), bf16)              # fx out
               + _nbytes((B, 2 * H), f32))              # acc scratch

    slab, fx = pl.pallas_call(
        functools.partial(_encoder_kernel, L),
        grid=(nT,),
        in_specs=[
            pl.BlockSpec((B, Gt), lambda g: (0, g)),          # x tile
            pl.BlockSpec((Gt, 2 * H), lambda g: (g, 0)),      # [W1|W2] tile
            const2d(packed["bn3"]),
            const2d(packed["hw"]), const2d(packed["hb"]),
            const2d(eps_z),
            const2d(packed["wd"]), const2d(packed["bd"]),
        ],
        out_specs=(pl.BlockSpec((B, _HEAD_W), lambda g: (0, 0)),
                   pl.BlockSpec((B, H), lambda g: (0, 0))),
        out_shape=(jax.ShapeDtypeStruct((B, _HEAD_W), f32),   # packed head slab
                   jax.ShapeDtypeStruct((B, H), bf16)),       # decoder hidden fx
        scratch_shapes=[pltpu.VMEM((B, 2 * H), f32)],
        compiler_params=_compiler_params(("arbitrary",), s1_vmem),
    )(x, packed["w12"], packed["bn3"], packed["hw"], packed["hb"],
      eps_z, packed["wd"], packed["bd"])

    # ---- stage 2 (fused): h + logits in VMEM + online softmax + mu ----
    # logits scratch stays f32 unless B*G*4 would blow the VMEM budget (v7x).
    logits_dtype = f32 if _nbytes((B, G), f32) <= (16 << 20) else bf16
    s2_vmem = (2 * _nbytes((B, H), bf16)                # fx (resident)
               + 2 * _nbytes((H, 2 * Gt), bf16)         # [Wr|Wh] tile
               + 2 * _nbytes((1, 2 * Gt), f32)          # [br|bh] tile
               + 2 * _nbytes((B, _HEAD_W), f32)         # slab
               + 2 * _nbytes((B, 1), f32)               # eps_l
               + 2 * 2 * _nbytes((B, Gt), f32)          # h + mu out tiles
               + _nbytes((nT, B, Gt), logits_dtype)     # logits scratch
               + 3 * _nbytes((B, 1), f32))              # m / s / l-over-s

    last = nT - 1
    # phase 0: stream tile g;  phase 1: hold the last tile (no re-streaming,
    # and the h output block is flushed exactly once).
    stream_idx = lambda p, g: (0, g * (1 - p) + last * p)

    h_out, mu = pl.pallas_call(
        functools.partial(_decoder_kernel, L, Gt),
        grid=(2, nT),
        in_specs=[
            pl.BlockSpec((B, H), lambda p, g: (0, 0)),        # fx (resident)
            pl.BlockSpec((H, 2 * Gt), stream_idx),            # [Wr|Wh] tile
            pl.BlockSpec((1, 2 * Gt), stream_idx),            # [br|bh] tile
            pl.BlockSpec((B, _HEAD_W), lambda p, g: (0, 0)),  # head slab
            pl.BlockSpec((B, 1), lambda p, g: (0, 0)),        # eps_l
        ],
        out_specs=(pl.BlockSpec((B, Gt), stream_idx),               # h
                   pl.BlockSpec((B, Gt), lambda p, g: (0, g * p))), # mu
        out_shape=(jax.ShapeDtypeStruct((B, G), f32),
                   jax.ShapeDtypeStruct((B, G), f32)),
        scratch_shapes=[pltpu.VMEM((nT, B, Gt), logits_dtype),
                        pltpu.VMEM((B, 1), f32),
                        pltpu.VMEM((B, 1), f32),
                        pltpu.VMEM((B, 1), f32)],
        compiler_params=_compiler_params(("arbitrary", "arbitrary"), s2_vmem),
    )(fx, packed["wrh"], packed["brh"], slab, eps_l)

    # unpack the lane-dense encoder head slab in plain JAX (tiny slices)
    mu_z = slab[:, 0:L]
    sigma_z = jnp.exp(slab[:, L:2 * L]) + 1e-4
    mu_l = slab[:, 2 * L:2 * L + 1]
    sigma_l = jnp.exp(slab[:, 2 * L + 1:2 * L + 2]) + 1e-4
    return mu_z, sigma_z, mu_l, sigma_l, mu, h_out


# --------------------- params / reference / harness --------------------------
def init_params(key, n_genes, n_hidden, n_latent):
    ks = jax.random.split(key, 9)
    f32 = jnp.float32

    def w(k, shape, scale=0.1):
        return (scale * jax.random.normal(k, shape)).astype(f32)

    def row(v):
        return v.reshape(1, -1).astype(f32)

    return {
        "w1": w(ks[0], (n_genes, n_hidden)), "b1": row(jnp.zeros(n_hidden)),
        "g1": row(jnp.ones(n_hidden)), "be1": row(jnp.zeros(n_hidden)),
        "wmz": w(ks[1], (n_hidden, n_latent)), "bmz": row(jnp.zeros(n_latent)),
        "wsz": w(ks[2], (n_hidden, n_latent)), "bsz": row(jnp.zeros(n_latent)),
        "w2": w(ks[3], (n_genes, n_hidden)), "b2": row(jnp.zeros(n_hidden)),
        "g2": row(jnp.ones(n_hidden)), "be2": row(jnp.zeros(n_hidden)),
        "wml": w(ks[4], (n_hidden, 1)), "bml": row(jnp.zeros(1)),
        "wsl": w(ks[5], (n_hidden, 1)), "bsl": row(jnp.zeros(1)),
        "wd": w(ks[6], (n_latent, n_hidden)), "bd": row(jnp.zeros(n_hidden)),
        "wr": w(ks[7], (n_hidden, n_genes)), "br": row(jnp.zeros(n_genes)),
        "wh": w(ks[8], (n_hidden, n_genes)), "bh": row(jnp.zeros(n_genes)),
    }


def _bf16_dot(a, w):
    return jnp.dot(a.astype(jnp.bfloat16), w.astype(jnp.bfloat16),
                   preferred_element_type=jnp.float32)


def reference_forward(x, eps_z, eps_l, params):
    """Pure-JAX reference with the same bf16-weight / f32-accumulate policy."""
    def bn_relu(h, g, b):
        m = jnp.mean(h, axis=0, keepdims=True)
        v = jnp.mean((h - m) ** 2, axis=0, keepdims=True)
        return jnp.maximum((h - m) * lax.rsqrt(v + 0.001) * g + b, 0.0)

    fx_z = bn_relu(_bf16_dot(x, params["w1"]) + params["b1"], params["g1"], params["be1"])
    fx_l = bn_relu(_bf16_dot(x, params["w2"]) + params["b2"], params["g2"], params["be2"])

    mu_z = _bf16_dot(fx_z, params["wmz"]) + params["bmz"]
    sigma_z = jnp.exp(_bf16_dot(fx_z, params["wsz"]) + params["bsz"]) + 1e-4
    z = mu_z + jnp.sqrt(sigma_z) * eps_z
    mu_l = _bf16_dot(fx_l, params["wml"]) + params["bml"]
    sigma_l = jnp.exp(_bf16_dot(fx_l, params["wsl"]) + params["bsl"]) + 1e-4
    l = jnp.exp(mu_l + jnp.sqrt(sigma_l) * eps_l)

    fx = jnp.maximum(_bf16_dot(z, params["wd"]) + params["bd"], 0.0)
    logits = _bf16_dot(fx, params["wr"]) + params["br"]
    rho = jax.nn.softmax(logits, axis=-1)
    mu = rho * l
    h = _bf16_dot(fx, params["wh"]) + params["bh"]
    return mu_z, sigma_z, mu_l, sigma_l, mu, h


if __name__ == "__main__":
    # batch multiple of 8 (f32 sublane), gene axis a multiple of the 512 tile
    # (nT = 2 exercises the cross-tile reduction / online-softmax carry);
    # module defaults n_hidden=128, n_latent=10.
    B, G, H, L = 8, 1024, 128, 10

    key = jax.random.PRNGKey(0)
    k_x, k_ez, k_el, k_p = jax.random.split(key, 4)

    x = jnp.abs(10.0 * jax.random.normal(k_x, (B, G))).astype(jnp.float32)
    eps_z = jax.random.normal(k_ez, (B, L)).astype(jnp.float32)
    eps_l = jax.random.normal(k_el, (B, 1)).astype(jnp.float32)

    params = init_params(k_p, G, H, L)
    packed = pack_params(params, gene_tile=512)

    outs = scvi_vae_forward(x, eps_z, eps_l, packed)
    jax.block_until_ready(outs)

    mu_z, sigma_z, mu_l, sigma_l, mu, h = outs
    assert mu_z.shape == (B, L) and sigma_z.shape == (B, L)
    assert mu_l.shape == (B, 1) and sigma_l.shape == (B, 1)
    assert mu.shape == (B, G) and h.shape == (B, G)

    refs = reference_forward(x, eps_z, eps_l, params)
    names = ("mu_z", "sigma_z", "mu_l", "sigma_l", "mu", "h")
    for name, got, ref in zip(names, outs, refs):
        assert bool(jnp.all(jnp.isfinite(got))), name
        scale = float(jnp.max(jnp.abs(ref))) + 1e-6
        err = float(jnp.max(jnp.abs(got - ref)))
        assert err <= 1e-2 * scale, f"{name}: max abs err {err} vs scale {scale}"

    print("KERNEL_OK")
</pallas_src>

<mosaic_0001>
module attributes {stable_mosaic.version = 11 : i64} {
  func.func @_encoder_kernel(%arg0: i32, %arg1: memref<8x512xf32, #tpu.memory_space<vmem>>, %arg2: memref<512x256xbf16, #tpu.memory_space<vmem>>, %arg3: memref<3x256xf32, #tpu.memory_space<vmem>>, %arg4: memref<256x128xbf16, #tpu.memory_space<vmem>>, %arg5: memref<1x128xf32, #tpu.memory_space<vmem>>, %arg6: memref<8x10xf32, #tpu.memory_space<vmem>>, %arg7: memref<10x128xbf16, #tpu.memory_space<vmem>>, %arg8: memref<1x128xf32, #tpu.memory_space<vmem>>, %arg9: memref<8x128xf32, #tpu.memory_space<vmem>>, %arg10: memref<8x128xbf16, #tpu.memory_space<vmem>>, %arg11: memref<8x256xf32, #tpu.memory_space<vmem>>) attributes {dimension_semantics = [#tpu.dimension_semantics<arbitrary>], iteration_bounds = array<i64: 2>, scalar_prefetch = 0 : i64, scratch_operands = 1 : i64, tpu.core_type = #tpu.core_type<tc>, window_params = [{transform_indices = @transform_0, window_bounds = array<i64: 8, 512>}, {transform_indices = @transform_1, window_bounds = array<i64: 512, 256>}, {pipeline_mode = #tpu.pipeline_mode<synchronous>, transform_indices = @transform_2, window_bounds = array<i64: 3, 256>}, {pipeline_mode = #tpu.pipeline_mode<synchronous>, transform_indices = @transform_3, window_bounds = array<i64: 256, 128>}, {pipeline_mode = #tpu.pipeline_mode<synchronous>, transform_indices = @transform_4, window_bounds = array<i64: 1, 128>}, {pipeline_mode = #tpu.pipeline_mode<synchronous>, transform_indices = @transform_5, window_bounds = array<i64: 8, 10>}, {pipeline_mode = #tpu.pipeline_mode<synchronous>, transform_indices = @transform_6, window_bounds = array<i64: 10, 128>}, {pipeline_mode = #tpu.pipeline_mode<synchronous>, transform_indices = @transform_7, window_bounds = array<i64: 1, 128>}, {pipeline_mode = #tpu.pipeline_mode<synchronous>, transform_indices = @transform_8, window_bounds = array<i64: 8, 128>}, {pipeline_mode = #tpu.pipeline_mode<synchronous>, transform_indices = @transform_9, window_bounds = array<i64: 8, 128>}]} {
    %c0_i32 = arith.constant 0 : i32
    %0 = arith.cmpi eq, %arg0, %c0_i32 : i32
    %1 = arith.extui %0 : i1 to i32
    %c0_i32_0 = arith.constant 0 : i32
    %2 = arith.cmpi ne, %1, %c0_i32_0 : i32
    scf.if %2 {
      %cst_9 = arith.constant 0.000000e+00 : f32
      %13 = vector.broadcast %cst_9 : f32 to vector<8x256xf32>
      %c0_10 = arith.constant 0 : index
      %c0_11 = arith.constant 0 : index
      %14 = vector.load %arg11[%c0_10, %c0_11] : memref<8x256xf32, #tpu.memory_space<vmem>>, vector<8x256xf32>
      tpu.vector_store %arg11[%c0_10, %c0_11], %13 {strides = array<i32>} : memref<8x256xf32, #tpu.memory_space<vmem>>, vector<8x256xf32>,
    } else {
    }
    %c0 = arith.constant 0 : index
    %c0_1 = arith.constant 0 : index
    %3 = vector.load %arg11[%c0, %c0_1] : memref<8x256xf32, #tpu.memory_space<vmem>>, vector<8x256xf32>
    %c0_2 = arith.constant 0 : index
    %c0_3 = arith.constant 0 : index
    %4 = vector.load %arg1[%c0_2, %c0_3] : memref<8x512xf32, #tpu.memory_space<vmem>>, vector<8x512xf32>
    %5 = arith.truncf %4 : vector<8x512xf32> to vector<8x512xbf16>
    %c0_4 = arith.constant 0 : index
    %c0_5 = arith.constant 0 : index
    %6 = vector.load %arg2[%c0_4, %c0_5] : memref<512x256xbf16, #tpu.memory_space<vmem>>, vector<512x256xbf16>
    %cst = arith.constant dense<0.000000e+00> : vector<8x256xf32>
    %7 = tpu.matmul %5, %6, %cst {dimension_numbers = #tpu.dot_dimension_numbers<[1], [0], [0], [1], [0, 0, 1, 1], [], []>} : vector<8x512xbf16>, vector<512x256xbf16>, vector<8x256xf32> -> vector<8x256xf32>
    %8 = arith.addf %3, %7 : vector<8x256xf32>
    %c0_6 = arith.constant 0 : index
    %c0_7 = arith.constant 0 : index
    %9 = vector.load %arg11[%c0_6, %c0_7] : memref<8x256xf32, #tpu.memory_space<vmem>>, vector<8x256xf32>
    tpu.vector_store %arg11[%c0_6, %c0_7], %8 {strides = array<i32>} : memref<8x256xf32, #tpu.memory_space<vmem>>, vector<8x256xf32>,
    %c1_i32 = arith.constant 1 : i32
    %10 = arith.cmpi eq, %arg0, %c1_i32 : i32
    %11 = arith.extui %10 : i1 to i32
    %c0_i32_8 = arith.constant 0 : i32
    %12 = arith.cmpi ne, %11, %c0_i32_8 : i32
    scf.if %12 {
      %c0_9 = arith.constant 0 : index
      %c0_10 = arith.constant 0 : index
      %13 = vector.load %arg11[%c0_9, %c0_10] : memref<8x256xf32, #tpu.memory_space<vmem>>, vector<8x256xf32>
      %c0_11 = arith.constant 0 : index
      %c0_12 = arith.constant 0 : index
      %14 = vector.load %arg3[%c0_11, %c0_12] : memref<3x256xf32, #tpu.memory_space<vmem>>, vector<1x256xf32>
      %15 = vector.broadcast %14 : vector<1x256xf32> to vector<8x256xf32>
      %16 = arith.addf %13, %15 : vector<8x256xf32>
      %cst_13 = arith.constant dense<0.000000e+00> : vector<256xf32>
      %17 = vector.multi_reduction <add>, %16, %cst_13 [0] : vector<8x256xf32> to vector<256xf32>
      %18 = vector.shape_cast %17 : vector<256xf32> to vector<1x256xf32>
      %cst_14 = arith.constant 8.000000e+00 : f32
      %19 = vector.broadcast %cst_14 : f32 to vector<1x256xf32>
      %20 = arith.divf %18, %19 : vector<1x256xf32>
      %21 = vector.broadcast %20 : vector<1x256xf32> to vector<8x256xf32>
      %22 = arith.subf %16, %21 : vector<8x256xf32>
      %23 = arith.mulf %22, %22 : vector<8x256xf32>
      %cst_15 = arith.constant dense<0.000000e+00> : vector<256xf32>
      %24 = vector.multi_reduction <add>, %23, %cst_15 [0] : vector<8x256xf32> to vector<256xf32>
      %25 = vector.shape_cast %24 : vector<256xf32> to vector<1x256xf32>
      %cst_16 = arith.constant 8.000000e+00 : f32
      %26 = vector.broadcast %cst_16 : f32 to vector<1x256xf32>
      %27 = arith.divf %25, %26 : vector<1x256xf32>
      %cst_17 = arith.constant 1.000000e-03 : f32
      %28 = vector.broadcast %cst_17 : f32 to vector<1x256xf32>
      %29 = arith.addf %27, %28 : vector<1x256xf32>
      %30 = math.rsqrt %29 : vector<1x256xf32>
      %31 = vector.broadcast %30 : vector<1x256xf32> to vector<8x256xf32>
      %32 = arith.mulf %22, %31 : vector<8x256xf32>
      %c1 = arith.constant 1 : index
      %c0_18 = arith.constant 0 : index
      %33 = vector.load %arg3[%c1, %c0_18] : memref<3x256xf32, #tpu.memory_space<vmem>>, vector<1x256xf32>
      %34 = vector.broadcast %33 : vector<1x256xf32> to vector<8x256xf32>
      %35 = arith.mulf %32, %34 : vector<8x256xf32>
      %c2 = arith.constant 2 : index
      %c0_19 = arith.constant 0 : index
      %36 = vector.load %arg3[%c2, %c0_19] : memref<3x256xf32, #tpu.memory_space<vmem>>, vector<1x256xf32>
      %37 = vector.broadcast %36 : vector<1x256xf32> to vector<8x256xf32>
      %38 = arith.addf %35, %37 : vector<8x256xf32>
      %cst_20 = arith.constant 0.000000e+00 : f32
      %39 = vector.broadcast %cst_20 : f32 to vector<8x256xf32>
      %40 = arith.maximumf %38, %39 : vector<8x256xf32>
      %41 = arith.truncf %40 : vector<8x256xf32> to vector<8x256xbf16>
      %c0_21 = arith.constant 0 : index
      %c0_22 = arith.constant 0 : index
      %42 = vector.load %arg4[%c0_21, %c0_22] : memref<256x128xbf16, #tpu.memory_space<vmem>>, vector<256x128xbf16>
      %cst_23 = arith.constant dense<0.000000e+00> : vector<8x128xf32>
      %43 = tpu.matmul %41, %42, %cst_23 {dimension_numbers = #tpu.dot_dimension_numbers<[1], [0], [0], [1], [0, 0, 1, 1], [], []>} : vector<8x256xbf16>, vector<256x128xbf16>, vector<8x128xf32> -> vector<8x128xf32>
      %c0_24 = arith.constant 0 : index
      %c0_25 = arith.constant 0 : index
      %44 = vector.load %arg5[%c0_24, %c0_25] : memref<1x128xf32, #tpu.memory_space<vmem>>, vector<1x128xf32>
      %45 = vector.broadcast %44 : vector<1x128xf32> to vector<8x128xf32>
      %46 = arith.addf %43, %45 : vector<8x128xf32>
      %c0_26 = arith.constant 0 : index
      %c0_27 = arith.constant 0 : index
      %47 = vector.load %arg9[%c0_26, %c0_27] : memref<8x128xf32, #tpu.memory_space<vmem>>, vector<8x128xf32>
      tpu.vector_store %arg9[%c0_26, %c0_27], %46 {strides = array<i32>} : memref<8x128xf32, #tpu.memory_space<vmem>>, vector<8x128xf32>,
      %48 = vector.extract_strided_slice %46 {offsets = [0, 0], sizes = [8, 10], strides = [1, 1]} : vector<8x128xf32> to vector<8x10xf32>
      %49 = vector.extract_strided_slice %46 {offsets = [0, 10], sizes = [8, 10], strides = [1, 1]} : vector<8x128xf32> to vector<8x10xf32>
      %50 = math.exp %49 : vector<8x10xf32>
      %cst_28 = arith.constant 9.99999974E-5 : f32
      %51 = vector.broadcast %cst_28 : f32 to vector<8x10xf32>
      %52 = arith.addf %50, %51 : vector<8x10xf32>
      %53 = math.sqrt %52 : vector<8x10xf32>
      %c0_29 = arith.constant 0 : index
      %c0_30 = arith.constant 0 : index
      %54 = vector.load %arg6[%c0_29, %c0_30] : memref<8x10xf32, #tpu.memory_space<vmem>>, vector<8x10xf32>
      %55 = arith.mulf %53, %54 : vector<8x10xf32>
      %56 = arith.addf %48, %55 : vector<8x10xf32>
      %57 = arith.truncf %56 : vector<8x10xf32> to vector<8x10xbf16>
      %c0_31 = arith.constant 0 : index
      %c0_32 = arith.constant 0 : index
      %58 = vector.load %arg7[%c0_31, %c0_32] : memref<10x128xbf16, #tpu.memory_space<vmem>>, vector<10x128xbf16>
      %cst_33 = arith.constant dense<0.000000e+00> : vector<8x128xf32>
      %59 = tpu.matmul %57, %58, %cst_33 {dimension_numbers = #tpu.dot_dimension_numbers<[1], [0], [0], [1], [0, 0, 1, 1], [], []>} : vector<8x10xbf16>, vector<10x128xbf16>, vector<8x128xf32> -> vector<8x128xf32>
      %c0_34 = arith.constant 0 : index
      %c0_35 = arith.constant 0 : index
      %60 = vector.load %arg8[%c0_34, %c0_35] : memref<1x128xf32, #tpu.memory_space<vmem>>, vector<1x128xf32>
      %61 = vector.broadcast %60 : vector<1x128xf32> to vector<8x128xf32>
      %62 = arith.addf %59, %61 : vector<8x128xf32>
      %cst_36 = arith.constant 0.000000e+00 : f32
      %63 = vector.broadcast %cst_36 : f32 to vector<8x128xf32>
      %64 = arith.maximumf %62, %63 : vector<8x128xf32>
      %65 = arith.truncf %64 : vector<8x128xf32> to vector<8x128xbf16>
      %c0_37 = arith.constant 0 : index
      %c0_38 = arith.constant 0 : index
      %66 = vector.load %arg10[%c0_37, %c0_38] : memref<8x128xbf16, #tpu.memory_space<vmem>>, vector<8x128xbf16>
      tpu.vector_store %arg10[%c0_37, %c0_38], %65 {strides = array<i32>} : memref<8x128xbf16, #tpu.memory_space<vmem>>, vector<8x128xbf16>,
    } else {
    }
    return
  }
  func.func @transform_0(%arg0: i32) -> (i32, i32) {
    %c0_i32 = arith.constant 0 : i32
    %c0_i32_0 = arith.constant 0 : i32
    return %c0_i32, %arg0 : i32, i32
  }
  func.func @transform_1(%arg0: i32) -> (i32, i32) {
    %c0_i32 = arith.constant 0 : i32
    %c0_i32_0 = arith.constant 0 : i32
    return %arg0, %c0_i32 : i32, i32
  }
  func.func @transform_2(%arg0: i32) -> (i32, i32) {
    %c0_i32 = arith.constant 0 : i32
    %c0_i32_0 = arith.constant 0 : i32
    %c0_i32_1 = arith.constant 0 : i32
    return %c0_i32, %c0_i32_0 : i32, i32
  }
  func.func @transform_3(%arg0: i32) -> (i32, i32) {
    %c0_i32 = arith.constant 0 : i32
    %c0_i32_0 = arith.constant 0 : i32
    %c0_i32_1 = arith.constant 0 : i32
    return %c0_i32, %c0_i32_0 : i32, i32
  }
  func.func @transform_4(%arg0: i32) -> (i32, i32) {
    %c0_i32 = arith.constant 0 : i32
    %c0_i32_0 = arith.constant 0 : i32
    %c0_i32_1 = arith.constant 0 : i32
    return %c0_i32, %c0_i32_0 : i32, i32
  }
  func.func @transform_5(%arg0: i32) -> (i32, i32) {
    %c0_i32 = arith.constant 0 : i32
    %c0_i32_0 = arith.constant 0 : i32
    %c0_i32_1 = arith.constant 0 : i32
    return %c0_i32, %c0_i32_0 : i32, i32
  }
  func.func @transform_6(%arg0: i32) -> (i32, i32) {
    %c0_i32 = arith.constant 0 : i32
    %c0_i32_0 = arith.constant 0 : i32
    %c0_i32_1 = arith.constant 0 : i32
    return %c0_i32, %c0_i32_0 : i32, i32
  }
  func.func @transform_7(%arg0: i32) -> (i32, i32) {
    %c0_i32 = arith.constant 0 : i32
    %c0_i32_0 = arith.constant 0 : i32
    %c0_i32_1 = arith.constant 0 : i32
    return %c0_i32, %c0_i32_0 : i32, i32
  }
  func.func @transform_8(%arg0: i32) -> (i32, i32) {
    %c0_i32 = arith.constant 0 : i32
    %c0_i32_0 = arith.constant 0 : i32
    %c0_i32_1 = arith.constant 0 : i32
    return %c0_i32, %c0_i32_0 : i32, i32
  }
  func.func @transform_9(%arg0: i32) -> (i32, i32) {
    %c0_i32 = arith.constant 0 : i32
    %c0_i32_0 = arith.constant 0 : i32
    %c0_i32_1 = arith.constant 0 : i32
    return %c0_i32, %c0_i32_0 : i32, i32
  }
}

</mosaic_0001>

<llo_original>
// kernel: tpu_custom_call.1
$region0: #{tpu_custom_call.1}
  #allocation0 [shape = 'u32[]', space=smem, size = 0x4, offset = 0x4, fixed_abs, tag = 'smem constant byte address 0x4 - core index']
  #allocation1 [shape = 'u32[144,128]{1,0:T(1,128)}', space=vmem, size = 0x12000, scoped, tag = 'internal scratch']
  #allocation2 [shape = 'f32[8,256]{1,0:T(8,128)}', space=vmem, size = 0x2000, scoped, tag = 'scratch operand']
  %s0 = inlined_call_operand.hbm [shape: f32[8,1024], index: 0, kind: input, shape index: {}]
  %s1 = inlined_call_operand.hbm [shape: bf16[1024,256], index: 1, kind: input, shape index: {}]
  %s2 = inlined_call_operand.hbm [shape: f32[3,256], index: 2, kind: input, shape index: {}]
  %s3 = inlined_call_operand.hbm [shape: bf16[256,128], index: 3, kind: input, shape index: {}]
  %s4 = inlined_call_operand.vmem [shape: f32[1,128], index: 4, kind: input, shape index: {}]
  %s5 = inlined_call_operand.vmem [shape: f32[8,10], index: 5, kind: input, shape index: {}]
  %s6 = inlined_call_operand.vmem [shape: bf16[10,128], index: 6, kind: input, shape index: {}]
  %s7 = inlined_call_operand.vmem [shape: f32[1,128], index: 7, kind: input, shape index: {}]
  %s8 = inlined_call_operand.hbm [shape: f32[8,128], index: 8, kind: output, shape index: {0}]
  %s9 = inlined_call_operand.hbm [shape: bf16[8,128], index: 9, kind: output, shape index: {1}]
  %10 = xla_tuple %s8, %s9
  %s11 = sld [smem:[#allocation0]]
  $region97: #{tpu_custom_call.1} parent=0
    _
  %s13 = ssub.s32 1, %s11
  %s14 = scalar_select 0, %s13, %s11
  $region1: #{tpu_custom_call.1} parent=0
    #allocation3 [shape = 'u8[32768]{0}', space=vmem, size = 0x8000, scoped, tag = 'input window, operand 0']
    #allocation4 [shape = 's32[2]{0}', space=sflag, size = 0x8, scoped, tag = 'scoped memory for tpu_custom_call.1']
    #allocation5 [shape = 's32[2]{0}', space=sflag, size = 0x8, scoped, tag = 'scoped memory for tpu_custom_call.1']
    #allocation6 [shape = 'u8[524288]{0}', space=vmem, size = 0x80000, scoped, tag = 'input window, operand 1']
    #allocation7 [shape = 's32[2]{0}', space=sflag, size = 0x8, scoped, tag = 'scoped memory for tpu_custom_call.1']
    #allocation8 [shape = 'u8[4096]{0}', space=vmem, size = 0x1000, scoped, tag = 'input window, operand 2, single buffered']
    #allocation9 [shape = 'u8[65536]{0}', space=vmem, size = 0x10000, scoped, tag = 'input window, operand 3, single buffered']
    #allocation10 [shape = 's32[1]{0}', space=sflag, size = 0x4, scoped, tag = 'scoped memory for tpu_custom_call.1']
    #allocation11 [shape = 'u8[4096]{0}', space=vmem, size = 0x1000, scoped, tag = 'output window, operand 0, single buffered']
    #allocation12 [shape = 'u8[2048]{0}', space=vmem, size = 0x800, scoped, tag = 'output window, operand 1, single buffered']
    #allocation13 [shape = 's32[1]{0}', space=sflag, size = 0x4, scoped, tag = 'scoped memory for tpu_custom_call.1']
    %15 = vsyncpa [#allocation4], 0
    %s16 = scalar_lea.sflag [#allocation4], 1
    %17 = vsyncpa %s16, 0
    %18 = vsyncpa [#allocation7], 0
    %s19 = scalar_lea.sflag [#allocation7], 1
    %20 = vsyncpa %s19, 0
    %21 = vsyncpa [#allocation10], 0
    %22 = vsyncpa [#allocation5], 0
    %23 = vsyncpa [#allocation13], 0
    loop: start=0, step=1, limit=4
    $region2: #{tpu_custom_call.1} parent=1 // loop_pre_header
      _
    $region3: #{tpu_custom_call.1} parent=1 // loop_header
      %s25 = sphi 0, %s29
      %p26 = scmp.ge.s32.totalorder %s25, 4
      %s35 = sphi 0, %s37
      %s38 = sphi 0, %s35
      %s39 = sphi 0, %s38
      %s55 = sphi 0, %s39
      %s61 = sphi 0, %s63
      %s64 = sphi 0, %s61
      %s65 = sphi 0, %s64
      %s81 = sphi 0, %s65
      %s85 = sphi 0, %s85
      %s87 = sphi 0, %s85
      %s88 = sphi 0, %s87
      %s102 = sphi 0, %s88
      %s106 = sphi 0, %s106
      %s108 = sphi 0, %s106
      %s109 = sphi 0, %s108
      %s123 = sphi 0, %s109
      %s127 = sphi 0, %s127
      %s129 = sphi 0, %s127
      %s130 = sphi 0, %s129
      %s144 = sphi 0, %s130
      %s148 = sphi 0, %s148
      %s150 = sphi 0, %s148
      %s151 = sphi 0, %s150
      %s165 = sphi 0, %s151
      %s169 = sphi 0, %s169
      %s171 = sphi 0, %s169
      %s172 = sphi 0, %s171
      %s186 = sphi 0, %s172
      %s190 = sphi 0, %s190
      %s192 = sphi 0, %s190
      %s193 = sphi 0, %s192
      %s207 = sphi 0, %s193
      %s211 = sphi 0, %s211
      %s213 = sphi 0, %s211
      %s214 = sphi 0, %s213
      %s228 = sphi 0, %s214
      %s232 = sphi 0, %s232
      %s234 = sphi 0, %s232
      %s235 = sphi 0, %s234
      %s249 = sphi 0, %s235
    $region4: #{tpu_custom_call.1} parent=1 // loop_header_branch
      %28 = sbr.rel (%p26) target = $region8
    $region5: #{tpu_custom_call.1} parent=1 // loop_body
      %s30 = ssub.s32 %s25, 1
      %s31 = ssub.s32 %s25, 2
      %s32 = sadd.s32 %s25, 1
      %s33 = ssub.s32 %s25, %s32
      %p34 = scmp.eq.s32.totalorder %s33, 0
      %s36 = sadd.s32 %s35, 1
      %s37 = scalar_select %p34, %s35, %s36
      %p40 = pneg %p34
      %p41 = scmp.eq.s32.totalorder %s25, 1
      %p42 = por %p40, %p41
      %p43 = scmp.ne.s32.totalorder %s35, %s38
      %p44 = scmp.eq.s32.totalorder %s25, 0
      %p45 = por %p43, %p44
      %p46 = scmp.ne.s32.totalorder %s35, %s38
      %p47 = scmp.eq.s32.totalorder %s30, 1
      %p48 = por %p46, %p47
      %p49 = scmp.ne.s32.totalorder %s38, %s39
      %p50 = scmp.eq.s32.totalorder %s30, 0
      %p51 = por %p49, %p50
      %p52 = scmp.ne.s32.totalorder %s38, %s39
      %p53 = scmp.eq.s32.totalorder %s31, 1
      %p54 = por %p52, %p53
      %p56 = scmp.ne.s32.totalorder %s39, %s55
      %p57 = scmp.eq.s32.totalorder %s31, 0
      %p58 = por %p56, %p57
      %s59 = ssub.s32 %s25, %s32
      %p60 = scmp.eq.s32.totalorder %s59, 0
      %s62 = sadd.s32 %s61, 1
      %s63 = scalar_select %p60, %s61, %s62
      %p66 = pneg %p60
      %p67 = scmp.eq.s32.totalorder %s25, 1
      %p68 = por %p66, %p67
      %p69 = scmp.ne.s32.totalorder %s61, %s64
      %p70 = scmp.eq.s32.totalorder %s25, 0
      %p71 = por %p69, %p70
      %p72 = scmp.ne.s32.totalorder %s61, %s64
      %p73 = scmp.eq.s32.totalorder %s30, 1
      %p74 = por %p72, %p73
      %p75 = scmp.ne.s32.totalorder %s64, %s65
      %p76 = scmp.eq.s32.totalorder %s30, 0
      %p77 = por %p75, %p76
      %p78 = scmp.ne.s32.totalorder %s64, %s65
      %p79 = scmp.eq.s32.totalorder %s31, 1
      %p80 = por %p78, %p79
      %p82 = scmp.ne.s32.totalorder %s65, %s81
      %p83 = scmp.eq.s32.totalorder %s31, 0
      %p84 = por %p82, %p83
      %s86 = sadd.s32 %s85, 1
      %p89 = scmp.eq.s32.totalorder %s25, 1
      %p90 = scmp.ne.s32.totalorder %s85, %s87
      %p91 = scmp.eq.s32.totalorder %s25, 0
      %p92 = por %p90, %p91
      %p93 = scmp.ne.s32.totalorder %s85, %s87
      %p94 = scmp.eq.s32.totalorder %s30, 1
      %p95 = por %p93, %p94
      %p96 = scmp.ne.s32.totalorder %s87, %s88
      %p97 = scmp.eq.s32.totalorder %s30, 0
      %p98 = por %p96, %p97
      %p99 = scmp.ne.s32.totalorder %s87, %s88
      %p100 = scmp.eq.s32.totalorder %s31, 1
      %p101 = por %p99, %p100
      %p103 = scmp.ne.s32.totalorder %s88, %s102
      %p104 = scmp.eq.s32.totalorder %s31, 0
      %p105 = por %p103, %p104
      %s107 = sadd.s32 %s106, 1
      %p110 = scmp.eq.s32.totalorder %s25, 1
      %p111 = scmp.ne.s32.totalorder %s106, %s108
      %p112 = scmp.eq.s32.totalorder %s25, 0
      %p113 = por %p111, %p112
      %p114 = scmp.ne.s32.totalorder %s106, %s108
      %p115 = scmp.eq.s32.totalorder %s30, 1
      %p116 = por %p114, %p115
      %p117 = scmp.ne.s32.totalorder %s108, %s109
      %p118 = scmp.eq.s32.totalorder %s30, 0
      %p119 = por %p117, %p118
      %p120 = scmp.ne.s32.totalorder %s108, %s109
      %p121 = scmp.eq.s32.totalorder %s31, 1
      %p122 = por %p120, %p121
      %p124 = scmp.ne.s32.totalorder %s109, %s123
      %p125 = scmp.eq.s32.totalorder %s31, 0
      %p126 = por %p124, %p125
      %s128 = sadd.s32 %s127, 1
      %p131 = scmp.eq.s32.totalorder %s25, 1
      %p132 = scmp.ne.s32.totalorder %s127, %s129
      %p133 = scmp.eq.s32.totalorder %s25, 0
      %p134 = por %p132, %p133
      %p135 = scmp.ne.s32.totalorder %s127, %s129
      %p136 = scmp.eq.s32.totalorder %s30, 1
      %p137 = por %p135, %p136
      %p138 = scmp.ne.s32.totalorder %s129, %s130
      %p139 = scmp.eq.s32.totalorder %s30, 0
      %p140 = por %p138, %p139
      %p141 = scmp.ne.s32.totalorder %s129, %s130
      %p142 = scmp.eq.s32.totalorder %s31, 1
      %p143 = por %p141, %p142
      %p145 = scmp.ne.s32.totalorder %s130, %s144
      %p146 = scmp.eq.s32.totalorder %s31, 0
      %p147 = por %p145, %p146
      %s149 = sadd.s32 %s148, 1
      %p152 = scmp.eq.s32.totalorder %s25, 1
      %p153 = scmp.ne.s32.totalorder %s148, %s150
      %p154 = scmp.eq.s32.totalorder %s25, 0
      %p155 = por %p153, %p154
      %p156 = scmp.ne.s32.totalorder %s148, %s150
      %p157 = scmp.eq.s32.totalorder %s30, 1
      %p158 = por %p156, %p157
      %p159 = scmp.ne.s32.totalorder %s150, %s151
      %p160 = scmp.eq.s32.totalorder %s30, 0
      %p161 = por %p159, %p160
      %p162 = scmp.ne.s32.totalorder %s150, %s151
      %p163 = scmp.eq.s32.totalorder %s31, 1
      %p164 = por %p162, %p163
      %p166 = scmp.ne.s32.totalorder %s151, %s165
      %p167 = scmp.eq.s32.totalorder %s31, 0
      %p168 = por %p166, %p167
      %s170 = sadd.s32 %s169, 1
      %p173 = scmp.eq.s32.totalorder %s25, 1
      %p174 = scmp.ne.s32.totalorder %s169, %s171
      %p175 = scmp.eq.s32.totalorder %s25, 0
      %p176 = por %p174, %p175
      %p177 = scmp.ne.s32.totalorder %s169, %s171
      %p178 = scmp.eq.s32.totalorder %s30, 1
      %p179 = por %p177, %p178
      %p180 = scmp.ne.s32.totalorder %s171, %s172
      %p181 = scmp.eq.s32.totalorder %s30, 0
      %p182 = por %p180, %p181
      %p183 = scmp.ne.s32.totalorder %s171, %s172
      %p184 = scmp.eq.s32.totalorder %s31, 1
      %p185 = por %p183, %p184
      %p187 = scmp.ne.s32.totalorder %s172, %s186
      %p188 = scmp.eq.s32.totalorder %s31, 0
      %p189 = por %p187, %p188
      %s191 = sadd.s32 %s190, 1
      %p194 = scmp.eq.s32.totalorder %s25, 1
      %p195 = scmp.ne.s32.totalorder %s190, %s192
      %p196 = scmp.eq.s32.totalorder %s25, 0
      %p197 = por %p195, %p196
      %p198 = scmp.ne.s32.totalorder %s190, %s192
      %p199 = scmp.eq.s32.totalorder %s30, 1
      %p200 = por %p198, %p199
      %p201 = scmp.ne.s32.totalorder %s192, %s193
      %p202 = scmp.eq.s32.totalorder %s30, 0
      %p203 = por %p201, %p202
      %p204 = scmp.ne.s32.totalorder %s192, %s193
      %p205 = scmp.eq.s32.totalorder %s31, 1
      %p206 = por %p204, %p205
      %p208 = scmp.ne.s32.totalorder %s193, %s207
      %p209 = scmp.eq.s32.totalorder %s31, 0
      %p210 = por %p208, %p209
      %s212 = sadd.s32 %s211, 1
      %p215 = scmp.eq.s32.totalorder %s25, 1
      %p216 = scmp.ne.s32.totalorder %s211, %s213
      %p217 = scmp.eq.s32.totalorder %s25, 0
      %p218 = por %p216, %p217
      %p219 = scmp.ne.s32.totalorder %s211, %s213
      %p220 = scmp.eq.s32.totalorder %s30, 1
      %p221 = por %p219, %p220
      %p222 = scmp.ne.s32.totalorder %s213, %s214
      %p223 = scmp.eq.s32.totalorder %s30, 0
      %p224 = por %p222, %p223
      %p225 = scmp.ne.s32.totalorder %s213, %s214
      %p226 = scmp.eq.s32.totalorder %s31, 1
      %p227 = por %p225, %p226
      %p229 = scmp.ne.s32.totalorder %s214, %s228
      %p230 = scmp.eq.s32.totalorder %s31, 0
      %p231 = por %p229, %p230
      %s233 = sadd.s32 %s232, 1
      %p236 = scmp.eq.s32.totalorder %s25, 1
      %p237 = scmp.ne.s32.totalorder %s232, %s234
      %p238 = scmp.eq.s32.totalorder %s25, 0
      %p239 = por %p237, %p238
      %p240 = scmp.ne.s32.totalorder %s232, %s234
      %p241 = scmp.eq.s32.totalorder %s30, 1
      %p242 = por %p240, %p241
      %p243 = scmp.ne.s32.totalorder %s234, %s235
      %p244 = scmp.eq.s32.totalorder %s30, 0
      %p245 = por %p243, %p244
      %p246 = scmp.ne.s32.totalorder %s234, %s235
      %p247 = scmp.eq.s32.totalorder %s31, 1
      %p248 = por %p246, %p247
      %p250 = scmp.ne.s32.totalorder %s235, %s249
      %p251 = scmp.eq.s32.totalorder %s31, 0
      %p252 = por %p250, %p251
      %p253 = scmp.le.s32.totalorder 1, %s25
      %p254 = scmp.lt.s32.totalorder %s25, 3
      %p255 = pnand %p253, %p254
      %p256 = pneg %p255
      // Predicated region
      $region9: #{tpu_custom_call.1} parent=5 // pred_check
        _
      $region10: #{tpu_custom_call.1} parent=5 // pred_check_branch
        %258 = sbr.rel (%p255) target = $region12
      $region11: #{tpu_custom_call.1} parent=5 // pred_region
        %s259 = ssub.s32 %s25, 1
        // Predicated region
        $region13: #{tpu_custom_call.1} parent=11 // pred_check
          %p260 = pneg %p98
        $region14: #{tpu_custom_call.1} parent=11 // pred_check_branch
          %262 = sbr.rel (%p260) target = $region16
        $region15: #{tpu_custom_call.1} parent=11 // pred_region
          %s264 = ssub.s32 128, 128
          %265 = vsyncadd [#allocation7], %s264
          %s267 = sshll.u32 [#allocation8], 4
          %s268 = int_to_ptr.vmem [resolvable:$true] %s267
          %270 = dma.hbm_to_vmem [thread:$0]  %s2, 128, %s268, [#allocation7]
        $region16: #{tpu_custom_call.1} parent=11 // pred_fallthru
          _
        // Predicated region
        $region17: #{tpu_custom_call.1} parent=11 // pred_check
          %p271 = pneg %p119
        $region18: #{tpu_custom_call.1} parent=11 // pred_check_branch
          %273 = sbr.rel (%p271) target = $region20
        $region19: #{tpu_custom_call.1} parent=11 // pred_region
          %s275 = ssub.s32 2048, 2048
          %276 = vsyncadd [#allocation10], %s275
          %s277 = sshll.u32 [#allocation9], 4
          %s278 = int_to_ptr.vmem [resolvable:$true] %s277
          %283 = dma.hbm_to_vmem [thread:$0]  %s3, 2048, %s278, [#allocation10], 64, 64, 4
        $region20: #{tpu_custom_call.1} parent=11 // pred_fallthru
          _
        // Predicated region
        $region21: #{tpu_custom_call.1} parent=11 // pred_check
          %p284 = pneg %p140
        $region22: #{tpu_custom_call.1} parent=11 // pred_check_branch
          %286 = sbr.rel (%p284) target = $region24
        $region23: #{tpu_custom_call.1} parent=11 // pred_region
          _
        $region24: #{tpu_custom_call.1} parent=11 // pred_fallthru
          _
        // Predicated region
        $region25: #{tpu_custom_call.1} parent=11 // pred_check
          %p287 = pneg %p161
        $region26: #{tpu_custom_call.1} parent=11 // pred_check_branch
          %289 = sbr.rel (%p287) target = $region28
        $region27: #{tpu_custom_call.1} parent=11 // pred_region
          _
        $region28: #{tpu_custom_call.1} parent=11 // pred_fallthru
          _
        // Predicated region
        $region29: #{tpu_custom_call.1} parent=11 // pred_check
          %p290 = pneg %p182
        $region30: #{tpu_custom_call.1} parent=11 // pred_check_branch
          %292 = sbr.rel (%p290) target = $region32
        $region31: #{tpu_custom_call.1} parent=11 // pred_region
          _
        $region32: #{tpu_custom_call.1} parent=11 // pred_fallthru
          _
        // Predicated region
        $region33: #{tpu_custom_call.1} parent=11 // pred_check
          %p293 = pneg %p203
        $region34: #{tpu_custom_call.1} parent=11 // pred_check_branch
          %295 = sbr.rel (%p293) target = $region36
        $region35: #{tpu_custom_call.1} parent=11 // pred_region
          _
        $region36: #{tpu_custom_call.1} parent=11 // pred_fallthru
          _
      $region12: #{tpu_custom_call.1} parent=5 // pred_fallthru
        _
      %p296 = scmp.lt.s32.totalorder %s25, 2
      // Predicated region
      $region37: #{tpu_custom_call.1} parent=5 // pred_check
        %p297 = pneg %p296
      $region38: #{tpu_custom_call.1} parent=5 // pred_check_branch
        %299 = sbr.rel (%p297) target = $region40
      $region39: #{tpu_custom_call.1} parent=5 // pred_region
        // Predicated region
        $region41: #{tpu_custom_call.1} parent=39 // pred_check
          %p300 = pneg %p45
        $region42: #{tpu_custom_call.1} parent=39 // pred_check_branch
          %302 = sbr.rel (%p300) target = $region44
        $region43: #{tpu_custom_call.1} parent=39 // pred_region
          %s303 = sand.u32 %s35, 1
          %s304 = scalar_lea.sflag [#allocation4], %s303
          %s305 = sand.u32 %s35, 1
          %s306 = smul.addr %s305, 32
          %s307 = scalar_lea.vmem [#allocation3], %s306
          %s308 = smul.u32 4, %s25
          %s310 = ssub.s32 512, 512
          %311 = vsyncadd %s304, %s310
          %s312 = smul.addr %s308, 128
          %s313 = scalar_lea.hbm %s0, %s312
          %s315 = sshll.u32 %s307, 4
          %s316 = int_to_ptr.vmem [resolvable:$true] %s315
          %318 = dma.hbm_to_vmem [thread:$0]  %s313, 512, %s316, %s304
        $region44: #{tpu_custom_call.1} parent=39 // pred_fallthru
          _
        // Predicated region
        $region45: #{tpu_custom_call.1} parent=39 // pred_check
          %p319 = pneg %p71
        $region46: #{tpu_custom_call.1} parent=39 // pred_check_branch
          %321 = sbr.rel (%p319) target = $region48
        $region47: #{tpu_custom_call.1} parent=39 // pred_region
          %s322 = sand.u32 %s25, 1
          %s323 = scalar_lea.sflag [#allocation7], %s322
          %s324 = sand.u32 %s61, 1
          %s325 = smul.addr %s324, 512
          %s326 = scalar_lea.vmem [#allocation6], %s325
          %s327 = smul.u32 64, %s25
          %s329 = ssub.s32 8192, 8192
          %330 = vsyncadd %s323, %s329
          %s331 = smul.addr %s327, 2
          %s332 = smul.addr %s331, 64
          %s333 = scalar_lea.hbm %s1, %s332
          %s334 = sshll.u32 %s326, 4
          %s335 = int_to_ptr.vmem [resolvable:$true] %s334
          %340 = dma.hbm_to_vmem [thread:$0]  %s333, 8192, %s335, %s323, 128, 128, 8
        $region48: #{tpu_custom_call.1} parent=39 // pred_fallthru
          _
      $region40: #{tpu_custom_call.1} parent=5 // pred_fallthru
        _
      %p341 = scmp.le.s32.totalorder 1, %s25
      %p342 = scmp.lt.s32.totalorder %s25, 3
      %p343 = pnand %p341, %p342
      %p344 = pneg %p343
      // Predicated region
      $region49: #{tpu_custom_call.1} parent=5 // pred_check
        _
      $region50: #{tpu_custom_call.1} parent=5 // pred_check_branch
        %346 = sbr.rel (%p343) target = $region52
      $region51: #{tpu_custom_call.1} parent=5 // pred_region
        %s347 = ssub.s32 %s25, 1
        %s348 = sand.u32 %s38, 1
        %s349 = scalar_lea.sflag [#allocation4], %s348
        %s350 = sand.u32 %s38, 1
        %s351 = smul.addr %s350, 32
        %s352 = scalar_lea.vmem [#allocation3], %s351
        // Predicated region
        $region53: #{tpu_custom_call.1} parent=51 // pred_check
          %p353 = pneg %p51
        $region54: #{tpu_custom_call.1} parent=51 // pred_check_branch
          %355 = sbr.rel (%p353) target = $region56
        $region55: #{tpu_custom_call.1} parent=51 // pred_region
          %356 = dma.done %s349, 512
        $region56: #{tpu_custom_call.1} parent=51 // pred_fallthru
          _
        %s357 = sand.u32 %s30, 1
        %s358 = scalar_lea.sflag [#allocation7], %s357
        %s359 = sand.u32 %s64, 1
        %s360 = smul.addr %s359, 512
        %s361 = scalar_lea.vmem [#allocation6], %s360
        // Predicated region
        $region57: #{tpu_custom_call.1} parent=51 // pred_check
          %p362 = pneg %p77
        $region58: #{tpu_custom_call.1} parent=51 // pred_check_branch
          %364 = sbr.rel (%p362) target = $region60
        $region59: #{tpu_custom_call.1} parent=51 // pred_region
          %365 = dma.done %s358, 8192
        $region60: #{tpu_custom_call.1} parent=51 // pred_fallthru
          _
        // Predicated region
        $region61: #{tpu_custom_call.1} parent=51 // pred_check
          %p366 = pneg %p98
        $region62: #{tpu_custom_call.1} parent=51 // pred_check_branch
          %368 = sbr.rel (%p366) target = $region64
        $region63: #{tpu_custom_call.1} parent=51 // pred_region
          %369 = dma.done [#allocation7], 128
        $region64: #{tpu_custom_call.1} parent=51 // pred_fallthru
          _
        // Predicated region
        $region65: #{tpu_custom_call.1} parent=51 // pred_check
          %p370 = pneg %p119
        $region66: #{tpu_custom_call.1} parent=51 // pred_check_branch
          %372 = sbr.rel (%p370) target = $region68
        $region67: #{tpu_custom_call.1} parent=51 // pred_region
          %373 = dma.done [#allocation10], 2048
        $region68: #{tpu_custom_call.1} parent=51 // pred_fallthru
          _
        %s374 = sand.u32 %s38, 1
        %s375 = scalar_lea.sflag [#allocation4], %s374
        %s376 = sand.u32 %s38, 1
        %s377 = smul.addr %s376, 32
        %s378 = scalar_lea.vmem [#allocation3], %s377
        %p379 = pneg %p51
        %p380 = pneg %p48
        %s381 = sand.u32 %s30, 1
        %s382 = scalar_lea.sflag [#allocation7], %s381
        %s383 = sand.u32 %s64, 1
        %s384 = smul.addr %s383, 512
        %s385 = scalar_lea.vmem [#allocation6], %s384
        %p386 = pneg %p77
        %p387 = pneg %p74
        %p388 = pneg %p98
        %p389 = pneg %p95
        %p390 = pneg %p119
        %p391 = pneg %p116
        %p392 = pneg %p140
        %p393 = pneg %p137
        %p394 = pneg %p161
        %p395 = pneg %p158
        %p396 = pneg %p182
        %p397 = pneg %p179
        %p398 = pneg %p203
        %p399 = pneg %p200
        %p400 = pneg %p224
        %p401 = pneg %p221
        %p402 = pneg %p245
        %p403 = pneg %p242
        %s404 = smul.u32 4, %s30
        %s405 = smul.u32 64, %s30
        %p407 = scmp.eq.s32.totalorder %s30, 0
        // Predicated region
        $region69: #{tpu_custom_call.1} parent=51 // pred_check
          %p408 = pneg %p407
        $region70: #{tpu_custom_call.1} parent=51 // pred_check_branch
          %410 = sbr.rel (%p408) target = $region72
        $region71: #{tpu_custom_call.1} parent=51 // pred_region
          %411 = vst [vmem:[#allocation2] sm:$0xff] 0.0
          %412 = vst [vmem:[#allocation2 + $0x8] sm:$0xff] 0.0
        $region72: #{tpu_custom_call.1} parent=51 // pred_fallthru
          _
        %v413 = vld [vmem:[#allocation2] sm:$0xff]
        %v414 = vld [vmem:[#allocation2 + $0x8] sm:$0xff]
        %v415 = vld [vmem:[%s352] sm:$0xff]
        %v416 = vld [vmem:[%s352 + $0x8] sm:$0xff]
        %v417 = vld [vmem:[%s352 + $0x10] sm:$0xff]
        %v418 = vld [vmem:[%s352 + $0x18] sm:$0xff]
        %v419 = vpack.c.bf16 %v415, %v415
        %v420 = vpack.c.bf16 %v416, %v416
        %v421 = vpack.c.bf16 %v417, %v417
        %v422 = vpack.c.bf16 %v418, %v418
        %v423 = vld [vmem:[%s361] sm:$0xff]
        %v424 = vld [vmem:[%s361 + $0x8] sm:$0xff]
        %v425 = vld [vmem:[%s361 + $0x10] sm:$0xff]
        %v426 = vld [vmem:[%s361 + $0x18] sm:$0xff]
        %v427 = vld [vmem:[%s361 + $0x20] sm:$0xff]
        %v428 = vld [vmem:[%s361 + $0x28] sm:$0xff]
        %v429 = vld [vmem:[%s361 + $0x30] sm:$0xff]
        %v430 = vld [vmem:[%s361 + $0x38] sm:$0xff]
        %v431 = vld [vmem:[%s361 + $0x40] sm:$0xff]
        %v432 = vld [vmem:[%s361 + $0x48] sm:$0xff]
        %v433 = vld [vmem:[%s361 + $0x50] sm:$0xff]
        %v434 = vld [vmem:[%s361 + $0x58] sm:$0xff]
        %v435 = vld [vmem:[%s361 + $0x60] sm:$0xff]
        %v436 = vld [vmem:[%s361 + $0x68] sm:$0xff]
        %v437 = vld [vmem:[%s361 + $0x70] sm:$0xff]
        %v438 = vld [vmem:[%s361 + $0x78] sm:$0xff]
        %v439 = vld [vmem:[%s361 + $0x80] sm:$0xff]
        %v440 = vld [vmem:[%s361 + $0x88] sm:$0xff]
        %v441 = vld [vmem:[%s361 + $0x90] sm:$0xff]
        %v442 = vld [vmem:[%s361 + $0x98] sm:$0xff]
        %v443 = vld [vmem:[%s361 + $0xa0] sm:$0xff]
        %v444 = vld [vmem:[%s361 + $0xa8] sm:$0xff]
        %v445 = vld [vmem:[%s361 + $0xb0] sm:$0xff]
        %v446 = vld [vmem:[%s361 + $0xb8] sm:$0xff]
        %v447 = vld [vmem:[%s361 + $0xc0] sm:$0xff]
        %v448 = vld [vmem:[%s361 + $0xc8] sm:$0xff]
        %v449 = vld [vmem:[%s361 + $0xd0] sm:$0xff]
        %v450 = vld [vmem:[%s361 + $0xd8] sm:$0xff]
        %v451 = vld [vmem:[%s361 + $0xe0] sm:$0xff]
        %v452 = vld [vmem:[%s361 + $0xe8] sm:$0xff]
        %v453 = vld [vmem:[%s361 + $0xf0] sm:$0xff]
        %v454 = vld [vmem:[%s361 + $0xf8] sm:$0xff]
        %v455 = vld [vmem:[%s361 + $0x100] sm:$0xff]
        %v456 = vld [vmem:[%s361 + $0x108] sm:$0xff]
        %v457 = vld [vmem:[%s361 + $0x110] sm:$0xff]
        %v458 = vld [vmem:[%s361 + $0x118] sm:$0xff]
        %v459 = vld [vmem:[%s361 + $0x120] sm:$0xff]
        %v460 = vld [vmem:[%s361 + $0x128] sm:$0xff]
        %v461 = vld [vmem:[%s361 + $0x130] sm:$0xff]
        %v462 = vld [vmem:[%s361 + $0x138] sm:$0xff]
        %v463 = vld [vmem:[%s361 + $0x140] sm:$0xff]
        %v464 = vld [vmem:[%s361 + $0x148] sm:$0xff]
        %v465 = vld [vmem:[%s361 + $0x150] sm:$0xff]
        %v466 = vld [vmem:[%s361 + $0x158] sm:$0xff]
        %v467 = vld [vmem:[%s361 + $0x160] sm:$0xff]
        %v468 = vld [vmem:[%s361 + $0x168] sm:$0xff]
        %v469 = vld [vmem:[%s361 + $0x170] sm:$0xff]
        %v470 = vld [vmem:[%s361 + $0x178] sm:$0xff]
        %v471 = vld [vmem:[%s361 + $0x180] sm:$0xff]
        %v472 = vld [vmem:[%s361 + $0x188] sm:$0xff]
        %v473 = vld [vmem:[%s361 + $0x190] sm:$0xff]
        %v474 = vld [vmem:[%s361 + $0x198] sm:$0xff]
        %v475 = vld [vmem:[%s361 + $0x1a0] sm:$0xff]
        %v476 = vld [vmem:[%s361 + $0x1a8] sm:$0xff]
        %v477 = vld [vmem:[%s361 + $0x1b0] sm:$0xff]
        %v478 = vld [vmem:[%s361 + $0x1b8] sm:$0xff]
        %v479 = vld [vmem:[%s361 + $0x1c0] sm:$0xff]
        %v480 = vld [vmem:[%s361 + $0x1c8] sm:$0xff]
        %v481 = vld [vmem:[%s361 + $0x1d0] sm:$0xff]
        %v482 = vld [vmem:[%s361 + $0x1d8] sm:$0xff]
        %v483 = vld [vmem:[%s361 + $0x1e0] sm:$0xff]
        %v484 = vld [vmem:[%s361 + $0x1e8] sm:$0xff]
        %v485 = vld [vmem:[%s361 + $0x1f0] sm:$0xff]
        %v486 = vld [vmem:[%s361 + $0x1f8] sm:$0xff]
        %v551 = vunpack.c.l.b16 %v423
        %v552 = vunpack.c.h.b16 %v423
        %v553 = vunpack.c.l.b16 %v424
        %v554 = vunpack.c.h.b16 %v424
        %v555 = vunpack.c.l.b16 %v425
        %v556 = vunpack.c.h.b16 %v425
        %v557 = vunpack.c.l.b16 %v426
        %v558 = vunpack.c.h.b16 %v426
        %v559 = vunpack.c.l.b16 %v427
        %v560 = vunpack.c.h.b16 %v427
        %v561 = vunpack.c.l.b16 %v428
        %v562 = vunpack.c.h.b16 %v428
        %v563 = vunpack.c.l.b16 %v429
        %v564 = vunpack.c.h.b16 %v429
        %v565 = vunpack.c.l.b16 %v430
        %v566 = vunpack.c.h.b16 %v430
        %v567 = vunpack.c.l.b16 %v431
        %v568 = vunpack.c.h.b16 %v431
        %v569 = vunpack.c.l.b16 %v432
        %v570 = vunpack.c.h.b16 %v432
        %v571 = vunpack.c.l.b16 %v433
        %v572 = vunpack.c.h.b16 %v433
        %v573 = vunpack.c.l.b16 %v434
        %v574 = vunpack.c.h.b16 %v434
        %v575 = vunpack.c.l.b16 %v435
        %v576 = vunpack.c.h.b16 %v435
        %v577 = vunpack.c.l.b16 %v436
        %v578 = vunpack.c.h.b16 %v436
        %v579 = vunpack.c.l.b16 %v437
        %v580 = vunpack.c.h.b16 %v437
        %v581 = vunpack.c.l.b16 %v438
        %v582 = vunpack.c.h.b16 %v438
        %v583 = vunpack.c.l.b16 %v439
        %v584 = vunpack.c.h.b16 %v439
        %v585 = vunpack.c.l.b16 %v440
        %v586 = vunpack.c.h.b16 %v440
        %v587 = vunpack.c.l.b16 %v441
        %v588 = vunpack.c.h.b16 %v441
        %v589 = vunpack.c.l.b16 %v442
        %v590 = vunpack.c.h.b16 %v442
        %v591 = vunpack.c.l.b16 %v443
        %v592 = vunpack.c.h.b16 %v443
        %v593 = vunpack.c.l.b16 %v444
        %v594 = vunpack.c.h.b16 %v444
        %v595 = vunpack.c.l.b16 %v445
        %v596 = vunpack.c.h.b16 %v445
        %v597 = vunpack.c.l.b16 %v446
        %v598 = vunpack.c.h.b16 %v446
        %v599 = vunpack.c.l.b16 %v447
        %v600 = vunpack.c.h.b16 %v447
        %v601 = vunpack.c.l.b16 %v448
        %v602 = vunpack.c.h.b16 %v448
        %v603 = vunpack.c.l.b16 %v449
        %v604 = vunpack.c.h.b16 %v449
        %v605 = vunpack.c.l.b16 %v450
        %v606 = vunpack.c.h.b16 %v450
        %v607 = vunpack.c.l.b16 %v451
        %v608 = vunpack.c.h.b16 %v451
        %v609 = vunpack.c.l.b16 %v452
        %v610 = vunpack.c.h.b16 %v452
        %v611 = vunpack.c.l.b16 %v453
        %v612 = vunpack.c.h.b16 %v453
        %v613 = vunpack.c.l.b16 %v454
        %v614 = vunpack.c.h.b16 %v454
        %v615 = vunpack.c.l.b16 %v455
        %v616 = vunpack.c.h.b16 %v455
        %v617 = vunpack.c.l.b16 %v456
        %v618 = vunpack.c.h.b16 %v456
        %v619 = vunpack.c.l.b16 %v457
        %v620 = vunpack.c.h.b16 %v457
        %v621 = vunpack.c.l.b16 %v458
        %v622 = vunpack.c.h.b16 %v458
        %v623 = vunpack.c.l.b16 %v459
        %v624 = vunpack.c.h.b16 %v459
        %v625 = vunpack.c.l.b16 %v460
        %v626 = vunpack.c.h.b16 %v460
        %v627 = vunpack.c.l.b16 %v461
        %v628 = vunpack.c.h.b16 %v461
        %v629 = vunpack.c.l.b16 %v462
        %v630 = vunpack.c.h.b16 %v462
        %v631 = vunpack.c.l.b16 %v463
        %v632 = vunpack.c.h.b16 %v463
        %v633 = vunpack.c.l.b16 %v464
        %v634 = vunpack.c.h.b16 %v464
        %v635 = vunpack.c.l.b16 %v465
        %v636 = vunpack.c.h.b16 %v465
        %v637 = vunpack.c.l.b16 %v466
        %v638 = vunpack.c.h.b16 %v466
        %v639 = vunpack.c.l.b16 %v467
        %v640 = vunpack.c.h.b16 %v467
        %v641 = vunpack.c.l.b16 %v468
        %v642 = vunpack.c.h.b16 %v468
        %v643 = vunpack.c.l.b16 %v469
        %v644 = vunpack.c.h.b16 %v469
        %v645 = vunpack.c.l.b16 %v470
        %v646 = vunpack.c.h.b16 %v470
        %v647 = vunpack.c.l.b16 %v471
        %v648 = vunpack.c.h.b16 %v471
        %v649 = vunpack.c.l.b16 %v472
        %v650 = vunpack.c.h.b16 %v472
        %v651 = vunpack.c.l.b16 %v473
        %v652 = vunpack.c.h.b16 %v473
        %v653 = vunpack.c.l.b16 %v474
        %v654 = vunpack.c.h.b16 %v474
        %v655 = vunpack.c.l.b16 %v475
        %v656 = vunpack.c.h.b16 %v475
        %v657 = vunpack.c.l.b16 %v476
        %v658 = vunpack.c.h.b16 %v476
        %v659 = vunpack.c.l.b16 %v477
        %v660 = vunpack.c.h.b16 %v477
        %v661 = vunpack.c.l.b16 %v478
        %v662 = vunpack.c.h.b16 %v478
        %v663 = vunpack.c.l.b16 %v479
        %v664 = vunpack.c.h.b16 %v479
        %v665 = vunpack.c.l.b16 %v480
        %v666 = vunpack.c.h.b16 %v480
        %v667 = vunpack.c.l.b16 %v481
        %v668 = vunpack.c.h.b16 %v481
        %v669 = vunpack.c.l.b16 %v482
        %v670 = vunpack.c.h.b16 %v482
        %v671 = vunpack.c.l.b16 %v483
        %v672 = vunpack.c.h.b16 %v483
        %v673 = vunpack.c.l.b16 %v484
        %v674 = vunpack.c.h.b16 %v484
        %v675 = vunpack.c.l.b16 %v485
        %v676 = vunpack.c.h.b16 %v485
        %v677 = vunpack.c.l.b16 %v486
        %v678 = vunpack.c.h.b16 %v486
        %v679 = vpack.c.b16 %v553, %v551
        %v680 = vpack.c.b16 %v554, %v552
        %v681 = vpack.c.b16 %v557, %v555
        %v682 = vpack.c.b16 %v558, %v556
        %v683 = vpack.c.b16 %v561, %v559
        %v684 = vpack.c.b16 %v562, %v560
        %v685 = vpack.c.b16 %v565, %v563
        %v686 = vpack.c.b16 %v566, %v564
        %v687 = vpack.c.b16 %v569, %v567
        %v688 = vpack.c.b16 %v570, %v568
        %v689 = vpack.c.b16 %v573, %v571
        %v690 = vpack.c.b16 %v574, %v572
        %v691 = vpack.c.b16 %v577, %v575
        %v692 = vpack.c.b16 %v578, %v576
        %v693 = vpack.c.b16 %v581, %v579
        %v694 = vpack.c.b16 %v582, %v580
        %v695 = vpack.c.b16 %v585, %v583
        %v696 = vpack.c.b16 %v586, %v584
        %v697 = vpack.c.b16 %v589, %v587
        %v698 = vpack.c.b16 %v590, %v588
        %v699 = vpack.c.b16 %v593, %v591
        %v700 = vpack.c.b16 %v594, %v592
        %v701 = vpack.c.b16 %v597, %v595
        %v702 = vpack.c.b16 %v598, %v596
        %v703 = vpack.c.b16 %v601, %v599
        %v704 = vpack.c.b16 %v602, %v600
        %v705 = vpack.c.b16 %v605, %v603
        %v706 = vpack.c.b16 %v606, %v604
        %v707 = vpack.c.b16 %v609, %v607
        %v708 = vpack.c.b16 %v610, %v608
        %v709 = vpack.c.b16 %v613, %v611
        %v710 = vpack.c.b16 %v614, %v612
        %v711 = vpack.c.b16 %v617, %v615
        %v712 = vpack.c.b16 %v618, %v616
        %v713 = vpack.c.b16 %v621, %v619
        %v714 = vpack.c.b16 %v622, %v620
        %v715 = vpack.c.b16 %v625, %v623
        %v716 = vpack.c.b16 %v626, %v624
        %v717 = vpack.c.b16 %v629, %v627
        %v718 = vpack.c.b16 %v630, %v628
        %v719 = vpack.c.b16 %v633, %v631
        %v720 = vpack.c.b16 %v634, %v632
        %v721 = vpack.c.b16 %v637, %v635
        %v722 = vpack.c.b16 %v638, %v636
        %v723 = vpack.c.b16 %v641, %v639
        %v724 = vpack.c.b16 %v642, %v640
        %v725 = vpack.c.b16 %v645, %v643
        %v726 = vpack.c.b16 %v646, %v644
        %v727 = vpack.c.b16 %v649, %v647
        %v728 = vpack.c.b16 %v650, %v648
        %v729 = vpack.c.b16 %v653, %v651
        %v730 = vpack.c.b16 %v654, %v652
        %v731 = vpack.c.b16 %v657, %v655
        %v732 = vpack.c.b16 %v658, %v656
        %v733 = vpack.c.b16 %v661, %v659
        %v734 = vpack.c.b16 %v662, %v660
        %v735 = vpack.c.b16 %v665, %v663
        %v736 = vpack.c.b16 %v666, %v664
        %v737 = vpack.c.b16 %v669, %v667
        %v738 = vpack.c.b16 %v670, %v668
        %v739 = vpack.c.b16 %v673, %v671
        %v740 = vpack.c.b16 %v674, %v672
        %v741 = vpack.c.b16 %v677, %v675
        %v742 = vpack.c.b16 %v678, %v676
        %807 = vmatprep.subr.bf16.mxu0 %v680
        %808 = vmatpush1.bf16.msra.mxu0 %v679
        %809 = vmatprep.subr.bf16.mxu0 %v682
        %810 = vmatpush1.bf16.msra.mxu0 %v681
        %811 = vmatprep.subr.bf16.mxu0 %v684
        %812 = vmatpush1.bf16.msra.mxu0 %v683
        %813 = vmatprep.subr.bf16.mxu0 %v686
        %814 = vmatpush1.bf16.msra.mxu0 %v685
        %815 = vmatprep.subr.bf16.mxu0 %v688
        %816 = vmatpush1.bf16.msra.mxu0 %v687
        %817 = vmatprep.subr.bf16.mxu0 %v690
        %818 = vmatpush1.bf16.msra.mxu0 %v689
        %819 = vmatprep.subr.bf16.mxu0 %v692
        %820 = vmatpush1.bf16.msra.mxu0 %v691
        %821 = vmatprep.subr.bf16.mxu0 %v694
        %822 = vmatpush1.bf16.msra.mxu0 %v693
        %823 = vmatprep.subr.bf16.mxu0 %v696
        %824 = vmatpush1.bf16.msra.mxu0 %v695
        %825 = vmatprep.subr.bf16.mxu0 %v698
        %826 = vmatpush1.bf16.msra.mxu0 %v697
        %827 = vmatprep.subr.bf16.mxu0 %v700
        %828 = vmatpush1.bf16.msra.mxu0 %v699
        %829 = vmatprep.subr.bf16.mxu0 %v702
        %830 = vmatpush1.bf16.msra.mxu0 %v701
        %831 = vmatprep.subr.bf16.mxu0 %v704
        %832 = vmatpush1.bf16.msra.mxu0 %v703
        %833 = vmatprep.subr.bf16.mxu0 %v706
        %834 = vmatpush1.bf16.msra.mxu0 %v705
        %835 = vmatprep.subr.bf16.mxu0 %v708
        %836 = vmatpush1.bf16.msra.mxu0 %v707
        %837 = vmatprep.subr.bf16.mxu0 %v710
        %838 = vmatpush1.bf16.msra.mxu0 %v709
        %839 = vmatprep.mubr.bf16.mxu0 %v420
        %840 = vmatmul.mubr.bf16.gmra.mrb[0].mxu0 %v419
        %v841 = vpop.f32.mrb[0].mxu0
        %v842 = vadd.f32 0.0, %v841
        %v843 = vpop.f32.mrb[0].mxu0
        %v844 = vadd.f32 0.0, %v843
        %v845 = vpop.f32.mrb[0].mxu0
        %v846 = vpop.f32.mrb[0].mxu0
        %847 = vdwg.mxu0
        %848 = vmatprep.subr.bf16.mxu0 %v712
        %849 = vmatpush1.bf16.msra.mxu0 %v711
        %850 = vmatprep.subr.bf16.mxu0 %v714
        %851 = vmatpush1.bf16.msra.mxu0 %v713
        %852 = vmatprep.subr.bf16.mxu0 %v716
        %853 = vmatpush1.bf16.msra.mxu0 %v715
        %854 = vmatprep.subr.bf16.mxu0 %v718
        %855 = vmatpush1.bf16.msra.mxu0 %v717
        %856 = vmatprep.subr.bf16.mxu0 %v720
        %857 = vmatpush1.bf16.msra.mxu0 %v719
        %858 = vmatprep.subr.bf16.mxu0 %v722
        %859 = vmatpush1.bf16.msra.mxu0 %v721
        %860 = vmatprep.subr.bf16.mxu0 %v724
        %861 = vmatpush1.bf16.msra.mxu0 %v723
        %862 = vmatprep.subr.bf16.mxu0 %v726
        %863 = vmatpush1.bf16.msra.mxu0 %v725
        %864 = vmatprep.subr.bf16.mxu0 %v728
        %865 = vmatpush1.bf16.msra.mxu0 %v727
        %866 = vmatprep.subr.bf16.mxu0 %v730
        %867 = vmatpush1.bf16.msra.mxu0 %v729
        %868 = vmatprep.subr.bf16.mxu0 %v732
        %869 = vmatpush1.bf16.msra.mxu0 %v731
        %870 = vmatprep.subr.bf16.mxu0 %v734
        %871 = vmatpush1.bf16.msra.mxu0 %v733
        %872 = vmatprep.subr.bf16.mxu0 %v736
        %873 = vmatpush1.bf16.msra.mxu0 %v735
        %874 = vmatprep.subr.bf16.mxu0 %v738
        %875 = vmatpush1.bf16.msra.mxu0 %v737
        %876 = vmatprep.subr.bf16.mxu0 %v740
        %877 = vmatpush1.bf16.msra.mxu0 %v739
        %878 = vmatprep.subr.bf16.mxu0 %v742
        %879 = vmatpush1.bf16.msra.mxu0 %v741
        %880 = vmatprep.mubr.bf16.mxu0 %v422
        %881 = vmatmul.mubr.bf16.gmra.mrb[0].mxu0 %v421
        %v882 = vpop.f32.mrb[0].mxu0
        %v883 = vadd.f32 %v842, %v882
        %v884 = vpop.f32.mrb[0].mxu0
        %v885 = vadd.f32 %v844, %v884
        %v886 = vpop.f32.mrb[0].mxu0
        %v887 = vpop.f32.mrb[0].mxu0
        %888 = vdwg.mxu0
        %v889 = vadd.f32 %v413, %v883
        %v890 = vadd.f32 %v414, %v885
        %891 = vst [vmem:[#allocation2] sm:$0xff] %v889
        %892 = vst [vmem:[#allocation2 + $0x8] sm:$0xff] %v890
        %p893 = scmp.eq.s32.totalorder %s30, 1
        // Predicated region
        $region73: #{tpu_custom_call.1} parent=51 // pred_check
          %p894 = pneg %p893
        $region74: #{tpu_custom_call.1} parent=51 // pred_check_branch
          %896 = sbr.rel (%p894) target = $region76
        $region75: #{tpu_custom_call.1} parent=51 // pred_region
          %v897 = vld [vmem:[#allocation2] sm:$0xff]
          %v898 = vld [vmem:[#allocation2 + $0x8] sm:$0xff]
          %v899 = vld [vmem:[#allocation8] ss:$4 sm:$0x3]
          %v901 = vlaneseq
          %v902 = vshrl.u32 %v901, 7
          %v903 = vsub.s32 0, %v902
          %v904 = vrot.slane %v899, %v903
          %v905 = vlaneseq
          %v906 = vshrl.u32 %v905, 7
          %v907 = vsub.s32 1, %v906
          %v908 = vrot.slane %v899, %v907
          %v911 = vadd.f32 %v897, %v904
          %v912 = vadd.f32 %v898, %v908
          %v913 = vrot.slane %v911, 4
          %v914 = vadd.f32 %v911, %v913
          %v915 = vrot.slane %v914, 2
          %v916 = vadd.f32 %v914, %v915
          %v917 = vrot.slane %v916, 1
          %v918 = vadd.f32 %v916, %v917
          %v919 = vrot.slane %v912, 4
          %v920 = vadd.f32 %v912, %v919
          %v921 = vrot.slane %v920, 2
          %v922 = vadd.f32 %v920, %v921
          %v923 = vrot.slane %v922, 1
          %v924 = vadd.f32 %v922, %v923
          %v925 = vrcp.pop 8.0
          %v926 = vmul.f32 %v918, %v925
          %v927 = vmul.f32 %v924, %v925
          %v928 = vsub.f32 %v911, %v926
          %v929 = vsub.f32 %v912, %v927
          %v930 = vmul.f32 %v928, %v928
          %v931 = vmul.f32 %v929, %v929
          %v932 = vrot.slane %v930, 4
          %v933 = vadd.f32 %v930, %v932
          %v934 = vrot.slane %v933, 2
          %v935 = vadd.f32 %v933, %v934
          %v936 = vrot.slane %v935, 1
          %v937 = vadd.f32 %v935, %v936
          %v938 = vrot.slane %v931, 4
          %v939 = vadd.f32 %v931, %v938
          %v940 = vrot.slane %v939, 2
          %v941 = vadd.f32 %v939, %v940
          %v942 = vrot.slane %v941, 1
          %v943 = vadd.f32 %v941, %v942
          %v944 = vmul.f32 %v937, %v925
          %v945 = vmul.f32 %v943, %v925
          %v946 = vadd.f32 %v944, 0.001
          %v947 = vadd.f32 %v945, 0.001
          %v948 = vrsqrt.pop %v946
          %v949 = vrsqrt.pop %v947
          %v950 = vmul.f32 %v928, %v948
          %v951 = vmul.f32 %v929, %v949
          %s952 = scalar_lea.vmem [#allocation8], 1
          %v953 = vld [vmem:[%s952] ss:$4 sm:$0x3]
          %v955 = vlaneseq
          %v956 = vshrl.u32 %v955, 7
          %v957 = vsub.s32 0, %v956
          %v958 = vrot.slane %v953, %v957
          %v959 = vlaneseq
          %v960 = vshrl.u32 %v959, 7
          %v961 = vsub.s32 1, %v960
          %v962 = vrot.slane %v953, %v961
          %v965 = vmul.f32 %v950, %v958
          %v966 = vmul.f32 %v951, %v962
          %s967 = scalar_lea.vmem [#allocation8], 2
          %v968 = vld [vmem:[%s967] ss:$4 sm:$0x3]
          %v970 = vlaneseq
          %v971 = vshrl.u32 %v970, 7
          %v972 = vsub.s32 0, %v971
          %v973 = vrot.slane %v968, %v972
          %v974 = vlaneseq
          %v975 = vshrl.u32 %v974, 7
          %v976 = vsub.s32 1, %v975
          %v977 = vrot.slane %v968, %v976
          %v980 = vadd.f32 %v965, %v973
          %v981 = vadd.f32 %v966, %v977
          %v982 = vmax.f32 %v980, 0.0
          %v983 = vmax.f32 %v981, 0.0
          %v984 = vpack.c.bf16 %v982, %v982
          %v985 = vpack.c.bf16 %v983, %v983
          %v986 = vld [vmem:[#allocation9] sm:$0xf]
          %v987 = vld [vmem:[#allocation9 + $0x4] sm:$0xf]
          %v988 = vld [vmem:[#allocation9 + $0x8] sm:$0xf]
          %v989 = vld [vmem:[#allocation9 + $0xc] sm:$0xf]
          %v990 = vld [vmem:[#allocation9 + $0x10] sm:$0xf]
          %v991 = vld [vmem:[#allocation9 + $0x14] sm:$0xf]
          %v992 = vld [vmem:[#allocation9 + $0x18] sm:$0xf]
          %v993 = vld [vmem:[#allocation9 + $0x1c] sm:$0xf]
          %v994 = vld [vmem:[#allocation9 + $0x20] sm:$0xf]
          %v995 = vld [vmem:[#allocation9 + $0x24] sm:$0xf]
          %v996 = vld [vmem:[#allocation9 + $0x28] sm:$0xf]
          %v997 = vld [vmem:[#allocation9 + $0x2c] sm:$0xf]
          %v998 = vld [vmem:[#allocation9 + $0x30] sm:$0xf]
          %v999 = vld [vmem:[#allocation9 + $0x34] sm:$0xf]
          %v1000 = vld [vmem:[#allocation9 + $0x38] sm:$0xf]
          %v1001 = vld [vmem:[#allocation9 + $0x3c] sm:$0xf]
          %v1002 = vld [vmem:[#allocation9 + $0x40] sm:$0xf]
          %v1003 = vld [vmem:[#allocation9 + $0x44] sm:$0xf]
          %v1004 = vld [vmem:[#allocation9 + $0x48] sm:$0xf]
          %v1005 = vld [vmem:[#allocation9 + $0x4c] sm:$0xf]
          %v1006 = vld [vmem:[#allocation9 + $0x50] sm:$0xf]
          %v1007 = vld [vmem:[#allocation9 + $0x54] sm:$0xf]
          %v1008 = vld [vmem:[#allocation9 + $0x58] sm:$0xf]
          %v1009 = vld [vmem:[#allocation9 + $0x5c] sm:$0xf]
          %v1010 = vld [vmem:[#allocation9 + $0x60] sm:$0xf]
          %v1011 = vld [vmem:[#allocation9 + $0x64] sm:$0xf]
          %v1012 = vld [vmem:[#allocation9 + $0x68] sm:$0xf]
          %v1013 = vld [vmem:[#allocation9 + $0x6c] sm:$0xf]
          %v1014 = vld [vmem:[#allocation9 + $0x70] sm:$0xf]
          %v1015 = vld [vmem:[#allocation9 + $0x74] sm:$0xf]
          %v1016 = vld [vmem:[#allocation9 + $0x78] sm:$0xf]
          %v1017 = vld [vmem:[#allocation9 + $0x7c] sm:$0xf]
          %v1018 = vld [vmem:[%s4] sm:$0x1]
          %v1020 = vlaneseq
          %v1021 = vshrl.u32 %v1020, 7
          %v1022 = vsub.s32 0, %v1021
          %v1023 = vrot.slane %v1018, %v1022
          %v1057 = vunpack.c.l.b16 %v986
          %v1058 = vunpack.c.l.b16 %v987
          %v1059 = vunpack.c.l.b16 %v988
          %v1060 = vunpack.c.l.b16 %v989
          %v1061 = vunpack.c.l.b16 %v990
          %v1062 = vunpack.c.l.b16 %v991
          %v1063 = vunpack.c.l.b16 %v992
          %v1064 = vunpack.c.l.b16 %v993
          %v1065 = vunpack.c.l.b16 %v994
          %v1066 = vunpack.c.l.b16 %v995
          %v1067 = vunpack.c.l.b16 %v996
          %v1068 = vunpack.c.l.b16 %v997
          %v1069 = vunpack.c.l.b16 %v998
          %v1070 = vunpack.c.l.b16 %v999
          %v1071 = vunpack.c.l.b16 %v1000
          %v1072 = vunpack.c.l.b16 %v1001
          %v1073 = vunpack.c.l.b16 %v1002
          %v1074 = vunpack.c.l.b16 %v1003
          %v1075 = vunpack.c.l.b16 %v1004
          %v1076 = vunpack.c.l.b16 %v1005
          %v1077 = vunpack.c.l.b16 %v1006
          %v1078 = vunpack.c.l.b16 %v1007
          %v1079 = vunpack.c.l.b16 %v1008
          %v1080 = vunpack.c.l.b16 %v1009
          %v1081 = vunpack.c.l.b16 %v1010
          %v1082 = vunpack.c.l.b16 %v1011
          %v1083 = vunpack.c.l.b16 %v1012
          %v1084 = vunpack.c.l.b16 %v1013
          %v1085 = vunpack.c.l.b16 %v1014
          %v1086 = vunpack.c.l.b16 %v1015
          %v1087 = vunpack.c.l.b16 %v1016
          %v1088 = vunpack.c.l.b16 %v1017
          %v1089 = vpack.c.b16 %v1058, %v1057
          %v1090 = vpack.c.b16 %v1060, %v1059
          %v1091 = vpack.c.b16 %v1062, %v1061
          %v1092 = vpack.c.b16 %v1064, %v1063
          %v1093 = vpack.c.b16 %v1066, %v1065
          %v1094 = vpack.c.b16 %v1068, %v1067
          %v1095 = vpack.c.b16 %v1070, %v1069
          %v1096 = vpack.c.b16 %v1072, %v1071
          %v1097 = vpack.c.b16 %v1074, %v1073
          %v1098 = vpack.c.b16 %v1076, %v1075
          %v1099 = vpack.c.b16 %v1078, %v1077
          %v1100 = vpack.c.b16 %v1080, %v1079
          %v1101 = vpack.c.b16 %v1082, %v1081
          %v1102 = vpack.c.b16 %v1084, %v1083
          %v1103 = vpack.c.b16 %v1086, %v1085
          %v1104 = vpack.c.b16 %v1088, %v1087
          %1121 = vmatprep.subr.bf16.mxu0 0
          %1122 = vmatpush1.bf16.msra.mxu0 %v1089
          %1123 = vmatprep.subr.bf16.mxu0 0
          %1124 = vmatpush1.bf16.msra.mxu0 %v1090
          %1125 = vmatprep.subr.bf16.mxu0 0
          %1126 = vmatpush1.bf16.msra.mxu0 %v1091
          %1127 = vmatprep.subr.bf16.mxu0 0
          %1128 = vmatpush1.bf16.msra.mxu0 %v1092
          %1129 = vmatprep.subr.bf16.mxu0 0
          %1130 = vmatpush1.bf16.msra.mxu0 %v1093
          %1131 = vmatprep.subr.bf16.mxu0 0
          %1132 = vmatpush1.bf16.msra.mxu0 %v1094
          %1133 = vmatprep.subr.bf16.mxu0 0
          %1134 = vmatpush1.bf16.msra.mxu0 %v1095
          %1135 = vmatprep.subr.bf16.mxu0 0
          %1136 = vmatpush1.bf16.msra.mxu0 %v1096
          %1137 = vmatprep.subr.bf16.mxu0 0
          %1138 = vmatpush1.bf16.msra.mxu0 %v1097
          %1139 = vmatprep.subr.bf16.mxu0 0
          %1140 = vmatpush1.bf16.msra.mxu0 %v1098
          %1141 = vmatprep.subr.bf16.mxu0 0
          %1142 = vmatpush1.bf16.msra.mxu0 %v1099
          %1143 = vmatprep.subr.bf16.mxu0 0
          %1144 = vmatpush1.bf16.msra.mxu0 %v1100
          %1145 = vmatprep.subr.bf16.mxu0 0
          %1146 = vmatpush1.bf16.msra.mxu0 %v1101
          %1147 = vmatprep.subr.bf16.mxu0 0
          %1148 = vmatpush1.bf16.msra.mxu0 %v1102
          %1149 = vmatprep.subr.bf16.mxu0 0
          %1150 = vmatpush1.bf16.msra.mxu0 %v1103
          %1151 = vmatprep.subr.bf16.mxu0 0
          %1152 = vmatpush1.bf16.msra.mxu0 %v1104
          %1153 = vmatprep.mubr.bf16.mxu0 %v985
          %1154 = vmatmul.mubr.bf16.gmra.mrb[0].mxu0 %v984
          %v1155 = vpop.f32.mrb[0].mxu0
          %v1156 = vadd.f32 %v1023, %v1155
          %v1157 = vpop.f32.mrb[0].mxu0
          %v1158 = vpop.f32.mrb[0].mxu0
          %v1159 = vpop.f32.mrb[0].mxu0
          %1160 = vdwg.mxu0
          %1161 = vst [vmem:[#allocation11] sm:$0xff] %v1156
          %v1162 = vmul.f32 %v1156, 1.442695
          %v1163 = vpow.pop %v1162
          %v1164 = vadd.f32 %v1163, 0.0001
          %v1165 = vrsqrt.pop %v1164
          %v1166 = vmul.f32 %v1164, %v1165
          %vm1167 = vcmp.eq.f32.partialorder %v1164, inf
          %v1168 = vsel %vm1167, %v1164, %v1166
          %vm1169 = vcmp.eq.f32.partialorder %v1164, 0.0
          %v1170 = vand.u32 %v1164, 2147483648
          %v1171 = vsel %vm1169, %v1170, %v1168
          %v1172 = vld [vmem:[%s5] sm:$0xff]
          %1174 = vrot.lane.b32.xlu0 %v1172, 10
          %v1175 = vpop.permute.xlu0 %1174
          %v1177 = vmul.f32 %v1171, %v1175
          %1179 = vrot.lane.b32.xlu0 %v1177, 118
          %v1180 = vpop.permute.xlu0 %1179
          %v1182 = vadd.f32 %v1156, %v1180
          %v1183 = vpack.c.bf16 %v1182, %v1182
          %v1184 = vld [vmem:[%s6] sm:$0xf]
          %v1185 = vld [vmem:[%s6 + $0x4] sm:$0x1]
          %v1186 = vld [vmem:[%s7] sm:$0x1]
          %v1188 = vlaneseq
          %v1189 = vshrl.u32 %v1188, 7
          %v1190 = vsub.s32 0, %v1189
          %v1191 = vrot.slane %v1186, %v1190
          %v1195 = vunpack.c.l.b16 %v1184
          %v1196 = vunpack.c.l.b16 %v1185
          %v1197 = vpack.c.b16 %v1196, %v1195
          %vm1198 = vcmask 80896
          %v1200 = vsel %vm1198, %v1183, 0
          %vm1202 = vcmask 1044480
          %v1204 = vsel %vm1202, %v1197, 0
          %1206 = vmatprep.subr.bf16.mxu0 0
          %1207 = vmatpush1.bf16.msra.mxu0 %v1204
          %1208 = vmatprep.subr.bf16.mxu0 0
          %1209 = vmatpush1.bf16.msra.mxu0 0
          %1210 = vmatprep.subr.bf16.mxu0 0
          %1211 = vmatpush1.bf16.msra.mxu0 0
          %1212 = vmatprep.subr.bf16.mxu0 0
          %1213 = vmatpush1.bf16.msra.mxu0 0
          %1214 = vmatprep.subr.bf16.mxu0 0
          %1215 = vmatpush1.bf16.msra.mxu0 0
          %1216 = vmatprep.subr.bf16.mxu0 0
          %1217 = vmatpush1.bf16.msra.mxu0 0
          %1218 = vmatprep.subr.bf16.mxu0 0
          %1219 = vmatpush1.bf16.msra.mxu0 0
          %1220 = vmatprep.subr.bf16.mxu0 0
          %1221 = vmatpush1.bf16.msra.mxu0 0
          %1222 = vmatprep.subr.bf16.mxu0 0
          %1223 = vmatpush1.bf16.msra.mxu0 0
          %1224 = vmatprep.subr.bf16.mxu0 0
          %1225 = vmatpush1.bf16.msra.mxu0 0
          %1226 = vmatprep.subr.bf16.mxu0 0
          %1227 = vmatpush1.bf16.msra.mxu0 0
          %1228 = vmatprep.subr.bf16.mxu0 0
          %1229 = vmatpush1.bf16.msra.mxu0 0
          %1230 = vmatprep.subr.bf16.mxu0 0
          %1231 = vmatpush1.bf16.msra.mxu0 0
          %1232 = vmatprep.subr.bf16.mxu0 0
          %1233 = vmatpush1.bf16.msra.mxu0 0
          %1234 = vmatprep.subr.bf16.mxu0 0
          %1235 = vmatpush1.bf16.msra.mxu0 0
          %1236 = vmatprep.subr.bf16.mxu0 0
          %1237 = vmatpush1.bf16.msra.mxu0 0
          %1238 = vmatprep.mubr.bf16.mxu0 0
          %1239 = vmatmul.mubr.bf16.gmra.mrb[0].mxu0 %v1200
          %v1240 = vpop.f32.mrb[0].mxu0
          %v1241 = vadd.f32 %v1191, %v1240
          %v1242 = vpop.f32.mrb[0].mxu0
          %v1243 = vpop.f32.mrb[0].mxu0
          %v1244 = vpop.f32.mrb[0].mxu0
          %1245 = vdwg.mxu0
          %v1246 = vmax.f32 %v1241, 0.0
          %v1247 = vpack.c.bf16 %v1246, %v1246
          %1248 = vst [vmem:[#allocation12] sm:$0xf] %v1247
        $region76: #{tpu_custom_call.1} parent=51 // pred_fallthru
          _
        // Predicated region
        $region77: #{tpu_custom_call.1} parent=51 // pred_check
          %p1249 = pneg %p221
        $region78: #{tpu_custom_call.1} parent=51 // pred_check_branch
          %1251 = sbr.rel (%p1249) target = $region80
        $region79: #{tpu_custom_call.1} parent=51 // pred_region
          %s1253 = ssub.s32 128, 128
          %1254 = vsyncadd [#allocation5], %s1253
          %s1256 = sshll.u32 [#allocation11], 4
          %s1257 = int_to_ptr.vmem [resolvable:$true] %s1256
          %1259 = dma.vmem_to_hbm [thread:$0]  %s1257, 128, %s8, [#allocation5]
        $region80: #{tpu_custom_call.1} parent=51 // pred_fallthru
          _
        // Predicated region
        $region81: #{tpu_custom_call.1} parent=51 // pred_check
          %p1260 = pneg %p242
        $region82: #{tpu_custom_call.1} parent=51 // pred_check_branch
          %1262 = sbr.rel (%p1260) target = $region84
        $region83: #{tpu_custom_call.1} parent=51 // pred_region
          %s1264 = ssub.s32 64, 64
          %1265 = vsyncadd [#allocation13], %s1264
          %s1267 = sshll.u32 [#allocation12], 4
          %s1268 = int_to_ptr.vmem [resolvable:$true] %s1267
          %1270 = dma.vmem_to_hbm [thread:$0]  %s1268, 64, %s9, [#allocation13]
        $region84: #{tpu_custom_call.1} parent=51 // pred_fallthru
          _
        // Predicated region
        $region85: #{tpu_custom_call.1} parent=51 // pred_check
          %p1271 = pneg %p221
        $region86: #{tpu_custom_call.1} parent=51 // pred_check_branch
          %1273 = sbr.rel (%p1271) target = $region88
        $region87: #{tpu_custom_call.1} parent=51 // pred_region
          %1274 = dma.done [#allocation5], 128
        $region88: #{tpu_custom_call.1} parent=51 // pred_fallthru
          _
        // Predicated region
        $region89: #{tpu_custom_call.1} parent=51 // pred_check
          %p1275 = pneg %p242
        $region90: #{tpu_custom_call.1} parent=51 // pred_check_branch
          %1277 = sbr.rel (%p1275) target = $region92
        $region91: #{tpu_custom_call.1} parent=51 // pred_region
          %1278 = dma.done [#allocation13], 64
        $region92: #{tpu_custom_call.1} parent=51 // pred_fallthru
          _
      $region52: #{tpu_custom_call.1} parent=5 // pred_fallthru
        _
      %p1279 = scmp.le.s32.totalorder 2, %s25
      // Predicated region
      $region93: #{tpu_custom_call.1} parent=5 // pred_check
        %p1280 = pneg %p1279
      $region94: #{tpu_custom_call.1} parent=5 // pred_check_branch
        %1282 = sbr.rel (%p1280) target = $region96
      $region95: #{tpu_custom_call.1} parent=5 // pred_region
        %s1283 = ssub.s32 %s25, 2
      $region96: #{tpu_custom_call.1} parent=5 // pred_fallthru
        _
    $region6: #{tpu_custom_call.1} parent=1 // loop_footer
      %s29 = sadd.s32 1, %s25
    $region7: #{tpu_custom_call.1} parent=1 // loop_footer_branch
      %24 = sbr.rel target = $region3
    $region8: #{tpu_custom_call.1} parent=1 // loop_exit
      _
    %1284 = vsyncpa [#allocation4], 1
    %s1285 = scalar_lea.sflag [#allocation4], 1
    %1286 = vsyncpa %s1285, 1
    %1287 = vsyncpa [#allocation7], 1
    %s1288 = scalar_lea.sflag [#allocation7], 1
    %1289 = vsyncpa %s1288, 1
    %1290 = vsyncpa [#allocation10], 1
    %1291 = vsyncpa [#allocation5], 1
    %s1292 = scalar_lea.sflag [#allocation5], 1
    %1293 = vsyncpa %s1292, 1
    %1294 = vsyncpa [#allocation13], 1

</llo_original>
